<compile_context>
chip_gen: v6e
topology: v6e:2x2x1
jax: 0.10.0
libtpu: 0.0.40
codegen_flags: <defaults>
</compile_context>

<pallas_src>
import functools

import jax
import jax.numpy as jnp
from jax.experimental import pallas as pl
from jax.experimental.pallas import tpu as pltpu

_EPS = 1e-5
_LANE = 128
_SUBLANE = 8
_VMEM_LIMIT = 48 * 1024 * 1024      # comfortably inside v7x's 64 MiB VMEM


def _round_up(x, m):
    return (x + m - 1) // m * m


def _pad2(a, rows, cols):
    return jnp.pad(a, ((0, rows - a.shape[0]), (0, cols - a.shape[1])))


# --------------------------------- kernels ----------------------------------- #

def _stats1_kernel(x_ref, w1_ref, s_ref, q_ref):
    """Pass 1: g = x @ w1; accumulate per-batch sum / sumsq of g (bn1 stats).

    No bias, no masking: padded rows of x are all-zero -> contribute exactly 0,
    and the +b1 shift is applied analytically in the glue."""
    @pl.when(pl.program_id(1) == 0)
    def _():
        s_ref[...] = jnp.zeros_like(s_ref)
        q_ref[...] = jnp.zeros_like(q_ref)

    bt, tn, cin = x_ref.shape
    x2 = x_ref[...].reshape(bt * tn, cin)                    # free: leading-dim merge
    g = jnp.dot(x2, w1_ref[...], preferred_element_type=jnp.float32)
    g3 = g.reshape(bt, tn, g.shape[-1])
    s_ref[...] += jnp.sum(g3, axis=1, keepdims=True)
    q_ref[...] += jnp.sum(g3 * g3, axis=1, keepdims=True)


def _stats2_kernel(x_ref, w1_ref, b1_ref, w2_ref, s_ref, q_ref):
    """Pass 2: g2 = relu(x @ w1' + b1') @ w2 (bn1 folded, no b2); accumulate
    per-batch sum / sumsq of g2.  Padded rows give the constant relu(b1') @ w2,
    which is subtracted analytically in the glue."""
    @pl.when(pl.program_id(1) == 0)
    def _():
        s_ref[...] = jnp.zeros_like(s_ref)
        q_ref[...] = jnp.zeros_like(q_ref)

    bt, tn, cin = x_ref.shape
    x2 = x_ref[...].reshape(bt * tn, cin)
    h1 = jnp.maximum(
        jnp.dot(x2, w1_ref[...], preferred_element_type=jnp.float32) + b1_ref[...],
        0.0)
    g2 = jnp.dot(h1.astype(jnp.bfloat16), w2_ref[...],
                 preferred_element_type=jnp.float32)
    g3 = g2.reshape(bt, tn, g2.shape[-1])
    s_ref[...] += jnp.sum(g3, axis=1, keepdims=True)
    q_ref[...] += jnp.sum(g3 * g3, axis=1, keepdims=True)


def _apply_identity_kernel(x_ref, w1_ref, b1_ref, w2_ref, ga_ref, gc_ref, o_ref):
    """Pass 3 (identity shortcut): out = relu(ga * (h1 @ w2) + gcf + x)."""
    bt, tn, cin = x_ref.shape
    x = x_ref[...]
    x2 = x.reshape(bt * tn, cin)
    h1 = jnp.maximum(
        jnp.dot(x2, w1_ref[...], preferred_element_type=jnp.float32) + b1_ref[...],
        0.0)
    h2 = jnp.dot(h1.astype(jnp.bfloat16), w2_ref[...],
                 preferred_element_type=jnp.float32)
    h2 = h2.reshape(bt, tn, h2.shape[-1])
    pre = h2 * ga_ref[...] + gc_ref[...]            # bn2 + gamma/beta + bn3 + b2 folded
    o_ref[...] = jnp.maximum(pre + x.astype(jnp.float32), 0.0).astype(o_ref.dtype)


def _apply_conv_sc_kernel(x_ref, wcat_ref, b1_ref, w2_ref, ga_ref, gc_ref, o_ref,
                          *, cout_p):
    """Pass 3 (conv shortcut): conv1 and shortcut share one matmul via [w1'|ws]."""
    bt, tn, cin = x_ref.shape
    x2 = x_ref[...].reshape(bt * tn, cin)
    hcat = jnp.dot(x2, wcat_ref[...], preferred_element_type=jnp.float32)
    h1 = jnp.maximum(hcat[:, :cout_p] + b1_ref[...], 0.0)   # lane-aligned split
    sc = hcat[:, cout_p:]
    h2 = jnp.dot(h1.astype(jnp.bfloat16), w2_ref[...],
                 preferred_element_type=jnp.float32)
    h2 = h2.reshape(bt, tn, cout_p)
    sc = sc.reshape(bt, tn, cout_p)
    pre = h2 * ga_ref[...] + gc_ref[...]            # includes ga*b2 + bs + bn3 shift
    o_ref[...] = jnp.maximum(pre + sc, 0.0).astype(o_ref.dtype)


# --------------------------------- wrapper ------------------------------------ #

@functools.partial(jax.jit, static_argnames=("tile_rows",))
def pointmlp_block(x_bnc, params, *, tile_rows=2048):
    """PointMLPBlock forward.  x_bnc: (B, N, Cin) channels-last -> (B, N, Cout)."""
    B, N, Cin = x_bnc.shape
    Cout = params["w1"].shape[1]
    identity_shortcut = "ws" not in params          # trace-time specialization
    if identity_shortcut:
        assert Cin == Cout

    cout_p = _round_up(Cout, _LANE)
    # x channels: only the identity shortcut needs x at the padded output width
    # (for the aligned residual add).  For a conv shortcut, Cin is often tiny
    # (geometric features) -> pad only to a sublane multiple to keep x's HBM
    # footprint / read traffic near-minimal.
    cin_p = cout_p if identity_shortcut else _round_up(Cin, _SUBLANE)

    # ---- row / batch tiling: pack several batches per grid step when N is small
    n_pad0 = _round_up(N, _SUBLANE)
    tile_n = min(n_pad0, _round_up(tile_rows, _SUBLANE))
    n_pad = _round_up(n_pad0, tile_n)
    n_tiles = n_pad // tile_n
    bt = max(1, min(B, tile_rows // tile_n))
    if B > 1:                        # keep >= 2 batch-groups so both v7x cores get work
        bt = min(bt, max(1, B // 2))
    while B % bt:
        bt -= 1
    grid = (B // bt, n_tiles)
    pad_rows = n_pad - N             # zero rows per batch, handled analytically
    cnt = float(B * N)

    # ---- pad params (lane-dense 128 on output channels), bf16 MXU operands ----
    x_bf = jnp.pad(x_bnc, ((0, 0), (0, n_pad - N), (0, cin_p - Cin))
                   ).astype(jnp.bfloat16)
    w1 = _pad2(params["w1"], cin_p, cout_p)
    b1 = _pad2(params["b1"], 1, cout_p)
    w2 = _pad2(params["w2"], cout_p, cout_p)
    b2 = _pad2(params["b2"], 1, cout_p)
    g1, be1 = _pad2(params["g1"], 1, cout_p), _pad2(params["be1"], 1, cout_p)
    g2, be2 = _pad2(params["g2"], 1, cout_p), _pad2(params["be2"], 1, cout_p)
    g3, be3 = _pad2(params["g3"], 1, cout_p), _pad2(params["be3"], 1, cout_p)
    w1_bf = w1.astype(jnp.bfloat16)
    w2_bf = w2.astype(jnp.bfloat16)

    # ---- block specs ----
    x_spec = pl.BlockSpec((bt, tile_n, cin_p), lambda g, n: (g, n, 0))
    o_spec = pl.BlockSpec((bt, tile_n, cout_p), lambda g, n: (g, n, 0))
    bstat_spec = pl.BlockSpec((bt, 1, cout_p), lambda g, n: (g, 0, 0))
    stat_shape = jax.ShapeDtypeStruct((B, 1, cout_p), jnp.float32)

    # triple-buffer x on the stats sweeps (light compute per byte) when useful
    x_stats_spec = x_spec
    if n_tiles >= 3:
        try:
            x_stats_spec = pl.BlockSpec((bt, tile_n, cin_p), lambda g, n: (g, n, 0),
                                        pipeline_mode=pl.Buffered(3))
        except TypeError:
            x_stats_spec = x_spec

    def full_spec(arr):
        zeros = (0,) * arr.ndim
        return pl.BlockSpec(arr.shape, lambda g, n: zeros)

    stats_cp = pltpu.CompilerParams(
        dimension_semantics=("parallel", "arbitrary"),
        vmem_limit_bytes=_VMEM_LIMIT)
    apply_cp = pltpu.CompilerParams(
        dimension_semantics=("parallel", "parallel"),
        vmem_limit_bytes=_VMEM_LIMIT)

    # ---------------------- pass 1: bn1 statistics ----------------------
    s1, q1 = pl.pallas_call(
        _stats1_kernel,
        grid=grid,
        in_specs=[x_stats_spec, full_spec(w1_bf)],
        out_specs=(bstat_spec, bstat_spec),
        out_shape=(stat_shape, stat_shape),
        compiler_params=stats_cp,
    )(x_bf, w1_bf)

    # E[x^2]-E[x]^2 in f32; fine for PointMLP-scale activations (clamped >= 0).
    mean_g = jnp.sum(s1[:, 0, :], axis=0) / cnt
    var1 = jnp.maximum(jnp.sum(q1[:, 0, :], axis=0) / cnt - mean_g * mean_g, 0.0)
    mu1 = mean_g + b1[0]                                     # b1 shift applied here
    a1 = g1[0] * jax.lax.rsqrt(var1 + _EPS)                  # (cout_p,)
    c1 = be1[0] - mu1 * a1

    # fold bn1 into conv1: relu(a1*(x@w1 + b1) + c1) == relu(x@(w1*a1) + (a1*b1 + c1))
    w1p_bf = (w1 * a1[None, :]).astype(jnp.bfloat16)
    b1p = (b1[0] * a1 + c1)[None, :]                         # (1, cout_p) f32

    # -------- pass 2: moments of g2 (-> bn2 / GeometryAffine mean / bn3) --------
    s2, q2 = pl.pallas_call(
        _stats2_kernel,
        grid=grid,
        in_specs=[x_stats_spec, full_spec(w1p_bf), full_spec(b1p), full_spec(w2_bf)],
        out_specs=(bstat_spec, bstat_spec),
        out_shape=(stat_shape, stat_shape),
        compiler_params=stats_cp,
    )(x_bf, w1p_bf, b1p, w2_bf)

    s2b, q2b = s2[:, 0, :], q2[:, 0, :]                      # (B, cout_p)
    if pad_rows:
        # analytic correction for zero-padded rows (constant image through conv2)
        c2 = jnp.dot(jnp.maximum(b1p, 0.0).astype(jnp.bfloat16), w2_bf,
                     preferred_element_type=jnp.float32)[0]
        s2b = s2b - pad_rows * c2[None, :]
        q2b = q2b - pad_rows * (c2 * c2)[None, :]

    # per-batch moments of h2 = g2 + b2
    m2g = s2b / float(N)
    msq2g = q2b / float(N)
    m2 = m2g + b2[0]
    msq2 = msq2g + 2.0 * b2[0] * m2g + b2[0] * b2[0]

    mu2 = jnp.mean(m2, axis=0)
    var2 = jnp.maximum(jnp.mean(msq2, axis=0) - mu2 * mu2, 0.0)
    scale2 = g2[0] * jax.lax.rsqrt(var2 + _EPS)
    shift2 = be2[0] - mu2 * scale2

    # GeometryAffine parameter MLP: tiny (B, C) work, plain JAX; linear2 split
    # column-wise so gamma/beta stay lane-aligned.
    gfeat = (m2 * scale2[None, :] + shift2[None, :])[:, :Cout]
    p = jnp.maximum(jnp.dot(gfeat, params["l1w"]) + params["l1b"], 0.0)
    l2w, l2b = params["l2w"], params["l2b"]
    gamma = jnp.dot(p, l2w[:, :Cout]) + l2b[:, :Cout]
    beta = jnp.dot(p, l2w[:, Cout:]) + l2b[:, Cout:]
    gamma = jnp.pad(gamma, ((0, 0), (0, cout_p - Cout)))
    beta = jnp.pad(beta, ((0, 0), (0, cout_p - Cout)))

    # bn2 + per-batch gamma/beta:  y = u_b * h2 + v_b
    u = gamma * scale2[None, :]
    v = gamma * shift2[None, :] + beta

    # bn3 moments derived analytically from the h2 moments (no extra sweep)
    mean3 = jnp.mean(u * m2 + v, axis=0)
    msq3 = jnp.mean(u * u * msq2 + 2.0 * u * v * m2 + v * v, axis=0)
    var3 = jnp.maximum(msq3 - mean3 * mean3, 0.0)
    scale3 = g3[0] * jax.lax.rsqrt(var3 + _EPS)
    shift3 = be3[0] - mean3 * scale3

    # single fused per-(batch, channel) affine; b2 (and the shortcut bias) folded in
    ga = u * scale3[None, :]                                 # (B, cout_p)
    gc = v * scale3[None, :] + shift3[None, :]
    gcf = ga * b2[0][None, :] + gc
    if not identity_shortcut:
        bs = _pad2(params["bs"], 1, cout_p)
        gcf = gcf + bs
    ga = ga[:, None, :]                                      # (B, 1, cout_p)
    gcf = gcf[:, None, :]

    # ---------------------------- pass 3: apply ----------------------------
    out_shape = jax.ShapeDtypeStruct((B, n_pad, cout_p), jnp.float32)
    mm_flops = 2 * B * n_pad * cout_p * (cin_p + cout_p
                                         + (0 if identity_shortcut else cin_p))
    bytes_accessed = (x_bf.size * 2 + B * n_pad * cout_p * 4
                      + (w1p_bf.size + w2_bf.size) * 2)
    cost = pl.CostEstimate(flops=mm_flops, transcendentals=0,
                           bytes_accessed=bytes_accessed)

    if identity_shortcut:
        out = pl.pallas_call(
            _apply_identity_kernel,
            grid=grid,
            in_specs=[x_spec, full_spec(w1p_bf), full_spec(b1p), full_spec(w2_bf),
                      bstat_spec, bstat_spec],
            out_specs=o_spec,
            out_shape=out_shape,
            compiler_params=apply_cp,
            cost_estimate=cost,
        )(x_bf, w1p_bf, b1p, w2_bf, ga, gcf)
    else:
        ws_bf = _pad2(params["ws"], cin_p, cout_p).astype(jnp.bfloat16)
        wcat_bf = jnp.concatenate([w1p_bf, ws_bf], axis=1)   # (cin_p, 2*cout_p)
        out = pl.pallas_call(
            functools.partial(_apply_conv_sc_kernel, cout_p=cout_p),
            grid=grid,
            in_specs=[x_spec, full_spec(wcat_bf), full_spec(b1p), full_spec(w2_bf),
                      bstat_spec, bstat_spec],
            out_specs=o_spec,
            out_shape=out_shape,
            compiler_params=apply_cp,
            cost_estimate=cost,
        )(x_bf, wcat_bf, b1p, w2_bf, ga, gcf)

    # no-op (elided by XLA) when n_pad == N and Cout is already lane-aligned
    return out[:, :N, :Cout]


# ------------------------------ params / reference ----------------------------- #

def init_params(key, in_ch, out_ch):
    """Synthetic parameters matching the PyTorch module's shapes.

    Conv1d(k=1) weight (out,in,1) and Linear weight (out,in) stored transposed as
    (in, out) so every op is a channels-last matmul.  BatchNorm weight=1, bias=0
    (PyTorch default).  When in_ch == out_ch the shortcut is nn.Identity, so no
    'ws'/'bs' entries exist (the kernel specializes it away)."""
    keys = jax.random.split(key, 10)
    s = 0.1

    def rnd(k, shape):
        return s * jax.random.normal(k, shape, dtype=jnp.float32)

    params = {
        "w1": rnd(keys[2], (in_ch, out_ch)), "b1": rnd(keys[3], (1, out_ch)),
        "g1": jnp.ones((1, out_ch), jnp.float32),
        "be1": jnp.zeros((1, out_ch), jnp.float32),
        "w2": rnd(keys[4], (out_ch, out_ch)), "b2": rnd(keys[5], (1, out_ch)),
        "g2": jnp.ones((1, out_ch), jnp.float32),
        "be2": jnp.zeros((1, out_ch), jnp.float32),
        "l1w": rnd(keys[6], (out_ch, 2 * out_ch)),
        "l1b": rnd(keys[8], (1, 2 * out_ch)),
        "l2w": rnd(keys[7], (2 * out_ch, 2 * out_ch)),
        "l2b": rnd(keys[9], (1, 2 * out_ch)),
        "g3": jnp.ones((1, out_ch), jnp.float32),
        "be3": jnp.zeros((1, out_ch), jnp.float32),
    }
    if in_ch != out_ch:
        params["ws"] = rnd(keys[0], (in_ch, out_ch))
        params["bs"] = rnd(keys[1], (1, out_ch))
    return params


def reference_block(x_bnc, params):
    """Pure-JAX reference mirroring the PyTorch module (training-mode BatchNorm).
    Matmul inputs cast to bf16 (f32 accumulation) to match the kernel's MXU path."""
    Cout = params["w1"].shape[1]

    def mm(a, w):
        return jnp.dot(a.astype(jnp.bfloat16), w.astype(jnp.bfloat16),
                       preferred_element_type=jnp.float32)

    def bn(h, g, be):
        flat = h.reshape(-1, h.shape[-1])
        mu = jnp.mean(flat, axis=0)
        var = jnp.mean((flat - mu) ** 2, axis=0)
        return (h - mu) * jax.lax.rsqrt(var + _EPS) * g[0] + be[0]

    if "ws" in params:
        sc = mm(x_bnc, params["ws"]) + params["bs"]
    else:
        sc = x_bnc.astype(jnp.bfloat16).astype(jnp.float32)

    h = mm(x_bnc, params["w1"]) + params["b1"]
    h = jnp.maximum(bn(h, params["g1"], params["be1"]), 0.0)
    h = mm(h, params["w2"]) + params["b2"]
    h = bn(h, params["g2"], params["be2"])

    gfeat = jnp.mean(h, axis=1)                                    # (B, C)
    p = jnp.maximum(jnp.dot(gfeat, params["l1w"]) + params["l1b"], 0.0)
    p = jnp.dot(p, params["l2w"]) + params["l2b"]
    gamma = p[:, :Cout][:, None, :]
    beta = p[:, Cout:][:, None, :]
    h = bn(gamma * h + beta, params["g3"], params["be3"])
    return jnp.maximum(h + sc, 0.0)


if __name__ == "__main__":
    B = 2

    # Config 1: channel-expanding block (Conv1d shortcut), PyTorch layout (B, C, N).
    in_ch, out_ch, N = 4, 8, 16
    x_bcn = jax.random.normal(jax.random.PRNGKey(0), (B, in_ch, N), jnp.float32)
    x_bnc = jnp.transpose(x_bcn, (0, 2, 1))          # kernel layout: channels-last
    params = init_params(jax.random.PRNGKey(42), in_ch, out_ch)

    out = jax.block_until_ready(pointmlp_block(x_bnc, params))
    ref = reference_block(x_bnc, params)
    assert out.shape == (B, N, out_ch)
    assert bool(jnp.all(jnp.isfinite(out)))
    assert bool(jnp.all(out >= 0.0))                 # final ReLU
    assert bool(jnp.allclose(out, ref, rtol=3e-2, atol=3e-2)), \
        float(jnp.max(jnp.abs(out - ref)))

    # Config 2: same-width block -> identity shortcut; N=20 exercises the analytic
    # padded-row correction (n_pad=24).
    N2 = 20
    x2 = jax.random.normal(jax.random.PRNGKey(1), (B, N2, out_ch), jnp.float32)
    params2 = init_params(jax.random.PRNGKey(7), out_ch, out_ch)
    out2 = jax.block_until_ready(pointmlp_block(x2, params2))
    ref2 = reference_block(x2, params2)
    assert out2.shape == (B, N2, out_ch)
    assert bool(jnp.all(jnp.isfinite(out2)))
    assert bool(jnp.allclose(out2, ref2, rtol=3e-2, atol=3e-2)), \
        float(jnp.max(jnp.abs(out2 - ref2)))

    print("KERNEL_OK")
</pallas_src>

<mosaic_0001>
module attributes {stable_mosaic.version = 11 : i64} {
  func.func @_stats1_kernel(%arg0: i32, %arg1: i32, %arg2: memref<1x16x8xbf16, #tpu.memory_space<vmem>>, %arg3: memref<8x128xbf16, #tpu.memory_space<vmem>>, %arg4: memref<1x1x128xf32, #tpu.memory_space<vmem>>, %arg5: memref<1x1x128xf32, #tpu.memory_space<vmem>>) attributes {dimension_semantics = [#tpu.dimension_semantics<parallel>, #tpu.dimension_semantics<arbitrary>], iteration_bounds = array<i64: 2, 1>, scalar_prefetch = 0 : i64, scratch_operands = 0 : i64, tpu.core_type = #tpu.core_type<tc>, window_params = [{transform_indices = @transform_0, window_bounds = array<i64: 1, 16, 8>}, {pipeline_mode = #tpu.pipeline_mode<synchronous>, transform_indices = @transform_1, window_bounds = array<i64: 8, 128>}, {transform_indices = @transform_2, window_bounds = array<i64: 1, 1, 128>}, {transform_indices = @transform_3, window_bounds = array<i64: 1, 1, 128>}]} {
    %c0_i32 = arith.constant 0 : i32
    %0 = arith.cmpi eq, %arg1, %c0_i32 : i32
    %1 = arith.extui %0 : i1 to i32
    %c0_i32_0 = arith.constant 0 : i32
    %2 = arith.cmpi ne, %1, %c0_i32_0 : i32
    scf.if %2 {
      %cst_19 = arith.constant 0.000000e+00 : f32
      %19 = vector.broadcast %cst_19 : f32 to vector<1x1x128xf32>
      %c0_20 = arith.constant 0 : index
      %c0_21 = arith.constant 0 : index
      %c0_22 = arith.constant 0 : index
      %20 = vector.load %arg4[%c0_20, %c0_21, %c0_22] : memref<1x1x128xf32, #tpu.memory_space<vmem>>, vector<1x1x128xf32>
      tpu.vector_store %arg4[%c0_20, %c0_21, %c0_22], %19 {strides = array<i32>} : memref<1x1x128xf32, #tpu.memory_space<vmem>>, vector<1x1x128xf32>,
      %cst_23 = arith.constant 0.000000e+00 : f32
      %21 = vector.broadcast %cst_23 : f32 to vector<1x1x128xf32>
      %c0_24 = arith.constant 0 : index
      %c0_25 = arith.constant 0 : index
      %c0_26 = arith.constant 0 : index
      %22 = vector.load %arg5[%c0_24, %c0_25, %c0_26] : memref<1x1x128xf32, #tpu.memory_space<vmem>>, vector<1x1x128xf32>
      tpu.vector_store %arg5[%c0_24, %c0_25, %c0_26], %21 {strides = array<i32>} : memref<1x1x128xf32, #tpu.memory_space<vmem>>, vector<1x1x128xf32>,
    } else {
    }
    %c0 = arith.constant 0 : index
    %c0_1 = arith.constant 0 : index
    %c0_2 = arith.constant 0 : index
    %3 = vector.load %arg2[%c0, %c0_1, %c0_2] : memref<1x16x8xbf16, #tpu.memory_space<vmem>>, vector<1x16x8xbf16>
    %4 = vector.shape_cast %3 : vector<1x16x8xbf16> to vector<16x8xbf16>
    %c0_3 = arith.constant 0 : index
    %c0_4 = arith.constant 0 : index
    %5 = vector.load %arg3[%c0_3, %c0_4] : memref<8x128xbf16, #tpu.memory_space<vmem>>, vector<8x128xbf16>
    %cst = arith.constant dense<0.000000e+00> : vector<16x128xf32>
    %6 = tpu.matmul %4, %5, %cst {dimension_numbers = #tpu.dot_dimension_numbers<[1], [0], [0], [1], [0, 0, 1, 1], [], []>} : vector<16x8xbf16>, vector<8x128xbf16>, vector<16x128xf32> -> vector<16x128xf32>
    %7 = vector.shape_cast %6 : vector<16x128xf32> to vector<1x16x128xf32>
    %c0_5 = arith.constant 0 : index
    %c0_6 = arith.constant 0 : index
    %c0_7 = arith.constant 0 : index
    %8 = vector.load %arg4[%c0_5, %c0_6, %c0_7] : memref<1x1x128xf32, #tpu.memory_space<vmem>>, vector<1x1x128xf32>
    %cst_8 = arith.constant dense<0.000000e+00> : vector<1x128xf32>
    %9 = vector.multi_reduction <add>, %7, %cst_8 [1] : vector<1x16x128xf32> to vector<1x128xf32>
    %10 = vector.shape_cast %9 : vector<1x128xf32> to vector<1x1x128xf32>
    %11 = arith.addf %8, %10 : vector<1x1x128xf32>
    %c0_9 = arith.constant 0 : index
    %c0_10 = arith.constant 0 : index
    %c0_11 = arith.constant 0 : index
    %12 = vector.load %arg4[%c0_9, %c0_10, %c0_11] : memref<1x1x128xf32, #tpu.memory_space<vmem>>, vector<1x1x128xf32>
    tpu.vector_store %arg4[%c0_9, %c0_10, %c0_11], %11 {strides = array<i32>} : memref<1x1x128xf32, #tpu.memory_space<vmem>>, vector<1x1x128xf32>,
    %c0_12 = arith.constant 0 : index
    %c0_13 = arith.constant 0 : index
    %c0_14 = arith.constant 0 : index
    %13 = vector.load %arg5[%c0_12, %c0_13, %c0_14] : memref<1x1x128xf32, #tpu.memory_space<vmem>>, vector<1x1x128xf32>
    %14 = arith.mulf %7, %7 : vector<1x16x128xf32>
    %cst_15 = arith.constant dense<0.000000e+00> : vector<1x128xf32>
    %15 = vector.multi_reduction <add>, %14, %cst_15 [1] : vector<1x16x128xf32> to vector<1x128xf32>
    %16 = vector.shape_cast %15 : vector<1x128xf32> to vector<1x1x128xf32>
    %17 = arith.addf %13, %16 : vector<1x1x128xf32>
    %c0_16 = arith.constant 0 : index
    %c0_17 = arith.constant 0 : index
    %c0_18 = arith.constant 0 : index
    %18 = vector.load %arg5[%c0_16, %c0_17, %c0_18] : memref<1x1x128xf32, #tpu.memory_space<vmem>>, vector<1x1x128xf32>
    tpu.vector_store %arg5[%c0_16, %c0_17, %c0_18], %17 {strides = array<i32>} : memref<1x1x128xf32, #tpu.memory_space<vmem>>, vector<1x1x128xf32>,
    return
  }
  func.func @transform_0(%arg0: i32, %arg1: i32) -> (i32, i32, i32) {
    %c0_i32 = arith.constant 0 : i32
    %c0_i32_0 = arith.constant 0 : i32
    return %arg0, %arg1, %c0_i32 : i32, i32, i32
  }
  func.func @transform_1(%arg0: i32, %arg1: i32) -> (i32, i32) {
    %c0_i32 = arith.constant 0 : i32
    %c0_i32_0 = arith.constant 0 : i32
    %c0_i32_1 = arith.constant 0 : i32
    return %c0_i32, %c0_i32_0 : i32, i32
  }
  func.func @transform_2(%arg0: i32, %arg1: i32) -> (i32, i32, i32) {
    %c0_i32 = arith.constant 0 : i32
    %c0_i32_0 = arith.constant 0 : i32
    %c0_i32_1 = arith.constant 0 : i32
    return %arg0, %c0_i32, %c0_i32_0 : i32, i32, i32
  }
  func.func @transform_3(%arg0: i32, %arg1: i32) -> (i32, i32, i32) {
    %c0_i32 = arith.constant 0 : i32
    %c0_i32_0 = arith.constant 0 : i32
    %c0_i32_1 = arith.constant 0 : i32
    return %arg0, %c0_i32, %c0_i32_0 : i32, i32, i32
  }
}

module attributes {stable_mosaic.version = 11 : i64} {
  func.func @_stats2_kernel(%arg0: i32, %arg1: i32, %arg2: memref<1x16x8xbf16, #tpu.memory_space<vmem>>, %arg3: memref<8x128xbf16, #tpu.memory_space<vmem>>, %arg4: memref<1x128xf32, #tpu.memory_space<vmem>>, %arg5: memref<128x128xbf16, #tpu.memory_space<vmem>>, %arg6: memref<1x1x128xf32, #tpu.memory_space<vmem>>, %arg7: memref<1x1x128xf32, #tpu.memory_space<vmem>>) attributes {dimension_semantics = [#tpu.dimension_semantics<parallel>, #tpu.dimension_semantics<arbitrary>], iteration_bounds = array<i64: 2, 1>, scalar_prefetch = 0 : i64, scratch_operands = 0 : i64, tpu.core_type = #tpu.core_type<tc>, window_params = [{transform_indices = @transform_0, window_bounds = array<i64: 1, 16, 8>}, {pipeline_mode = #tpu.pipeline_mode<synchronous>, transform_indices = @transform_1, window_bounds = array<i64: 8, 128>}, {pipeline_mode = #tpu.pipeline_mode<synchronous>, transform_indices = @transform_2, window_bounds = array<i64: 1, 128>}, {pipeline_mode = #tpu.pipeline_mode<synchronous>, transform_indices = @transform_3, window_bounds = array<i64: 128, 128>}, {transform_indices = @transform_4, window_bounds = array<i64: 1, 1, 128>}, {transform_indices = @transform_5, window_bounds = array<i64: 1, 1, 128>}]} {
    %c0_i32 = arith.constant 0 : i32
    %0 = arith.cmpi eq, %arg1, %c0_i32 : i32
    %1 = arith.extui %0 : i1 to i32
    %c0_i32_0 = arith.constant 0 : i32
    %2 = arith.cmpi ne, %1, %c0_i32_0 : i32
    scf.if %2 {
      %cst_25 = arith.constant 0.000000e+00 : f32
      %27 = vector.broadcast %cst_25 : f32 to vector<1x1x128xf32>
      %c0_26 = arith.constant 0 : index
      %c0_27 = arith.constant 0 : index
      %c0_28 = arith.constant 0 : index
      %28 = vector.load %arg6[%c0_26, %c0_27, %c0_28] : memref<1x1x128xf32, #tpu.memory_space<vmem>>, vector<1x1x128xf32>
      tpu.vector_store %arg6[%c0_26, %c0_27, %c0_28], %27 {strides = array<i32>} : memref<1x1x128xf32, #tpu.memory_space<vmem>>, vector<1x1x128xf32>,
      %cst_29 = arith.constant 0.000000e+00 : f32
      %29 = vector.broadcast %cst_29 : f32 to vector<1x1x128xf32>
      %c0_30 = arith.constant 0 : index
      %c0_31 = arith.constant 0 : index
      %c0_32 = arith.constant 0 : index
      %30 = vector.load %arg7[%c0_30, %c0_31, %c0_32] : memref<1x1x128xf32, #tpu.memory_space<vmem>>, vector<1x1x128xf32>
      tpu.vector_store %arg7[%c0_30, %c0_31, %c0_32], %29 {strides = array<i32>} : memref<1x1x128xf32, #tpu.memory_space<vmem>>, vector<1x1x128xf32>,
    } else {
    }
    %c0 = arith.constant 0 : index
    %c0_1 = arith.constant 0 : index
    %c0_2 = arith.constant 0 : index
    %3 = vector.load %arg2[%c0, %c0_1, %c0_2] : memref<1x16x8xbf16, #tpu.memory_space<vmem>>, vector<1x16x8xbf16>
    %4 = vector.shape_cast %3 : vector<1x16x8xbf16> to vector<16x8xbf16>
    %c0_3 = arith.constant 0 : index
    %c0_4 = arith.constant 0 : index
    %5 = vector.load %arg3[%c0_3, %c0_4] : memref<8x128xbf16, #tpu.memory_space<vmem>>, vector<8x128xbf16>
    %cst = arith.constant dense<0.000000e+00> : vector<16x128xf32>
    %6 = tpu.matmul %4, %5, %cst {dimension_numbers = #tpu.dot_dimension_numbers<[1], [0], [0], [1], [0, 0, 1, 1], [], []>} : vector<16x8xbf16>, vector<8x128xbf16>, vector<16x128xf32> -> vector<16x128xf32>
    %c0_5 = arith.constant 0 : index
    %c0_6 = arith.constant 0 : index
    %7 = vector.load %arg4[%c0_5, %c0_6] : memref<1x128xf32, #tpu.memory_space<vmem>>, vector<1x128xf32>
    %8 = vector.broadcast %7 : vector<1x128xf32> to vector<16x128xf32>
    %9 = arith.addf %6, %8 : vector<16x128xf32>
    %cst_7 = arith.constant 0.000000e+00 : f32
    %10 = vector.broadcast %cst_7 : f32 to vector<16x128xf32>
    %11 = arith.maximumf %9, %10 : vector<16x128xf32>
    %12 = arith.truncf %11 : vector<16x128xf32> to vector<16x128xbf16>
    %c0_8 = arith.constant 0 : index
    %c0_9 = arith.constant 0 : index
    %13 = vector.load %arg5[%c0_8, %c0_9] : memref<128x128xbf16, #tpu.memory_space<vmem>>, vector<128x128xbf16>
    %cst_10 = arith.constant dense<0.000000e+00> : vector<16x128xf32>
    %14 = tpu.matmul %12, %13, %cst_10 {dimension_numbers = #tpu.dot_dimension_numbers<[1], [0], [0], [1], [0, 0, 1, 1], [], []>} : vector<16x128xbf16>, vector<128x128xbf16>, vector<16x128xf32> -> vector<16x128xf32>
    %15 = vector.shape_cast %14 : vector<16x128xf32> to vector<1x16x128xf32>
    %c0_11 = arith.constant 0 : index
    %c0_12 = arith.constant 0 : index
    %c0_13 = arith.constant 0 : index
    %16 = vector.load %arg6[%c0_11, %c0_12, %c0_13] : memref<1x1x128xf32, #tpu.memory_space<vmem>>, vector<1x1x128xf32>
    %cst_14 = arith.constant dense<0.000000e+00> : vector<1x128xf32>
    %17 = vector.multi_reduction <add>, %15, %cst_14 [1] : vector<1x16x128xf32> to vector<1x128xf32>
    %18 = vector.shape_cast %17 : vector<1x128xf32> to vector<1x1x128xf32>
    %19 = arith.addf %16, %18 : vector<1x1x128xf32>
    %c0_15 = arith.constant 0 : index
    %c0_16 = arith.constant 0 : index
    %c0_17 = arith.constant 0 : index
    %20 = vector.load %arg6[%c0_15, %c0_16, %c0_17] : memref<1x1x128xf32, #tpu.memory_space<vmem>>, vector<1x1x128xf32>
    tpu.vector_store %arg6[%c0_15, %c0_16, %c0_17], %19 {strides = array<i32>} : memref<1x1x128xf32, #tpu.memory_space<vmem>>, vector<1x1x128xf32>,
    %c0_18 = arith.constant 0 : index
    %c0_19 = arith.constant 0 : index
    %c0_20 = arith.constant 0 : index
    %21 = vector.load %arg7[%c0_18, %c0_19, %c0_20] : memref<1x1x128xf32, #tpu.memory_space<vmem>>, vector<1x1x128xf32>
    %22 = arith.mulf %15, %15 : vector<1x16x128xf32>
    %cst_21 = arith.constant dense<0.000000e+00> : vector<1x128xf32>
    %23 = vector.multi_reduction <add>, %22, %cst_21 [1] : vector<1x16x128xf32> to vector<1x128xf32>
    %24 = vector.shape_cast %23 : vector<1x128xf32> to vector<1x1x128xf32>
    %25 = arith.addf %21, %24 : vector<1x1x128xf32>
    %c0_22 = arith.constant 0 : index
    %c0_23 = arith.constant 0 : index
    %c0_24 = arith.constant 0 : index
    %26 = vector.load %arg7[%c0_22, %c0_23, %c0_24] : memref<1x1x128xf32, #tpu.memory_space<vmem>>, vector<1x1x128xf32>
    tpu.vector_store %arg7[%c0_22, %c0_23, %c0_24], %25 {strides = array<i32>} : memref<1x1x128xf32, #tpu.memory_space<vmem>>, vector<1x1x128xf32>,
    return
  }
  func.func @transform_0(%arg0: i32, %arg1: i32) -> (i32, i32, i32) {
    %c0_i32 = arith.constant 0 : i32
    %c0_i32_0 = arith.constant 0 : i32
    return %arg0, %arg1, %c0_i32 : i32, i32, i32
  }
  func.func @transform_1(%arg0: i32, %arg1: i32) -> (i32, i32) {
    %c0_i32 = arith.constant 0 : i32
    %c0_i32_0 = arith.constant 0 : i32
    %c0_i32_1 = arith.constant 0 : i32
    return %c0_i32, %c0_i32_0 : i32, i32
  }
  func.func @transform_2(%arg0: i32, %arg1: i32) -> (i32, i32) {
    %c0_i32 = arith.constant 0 : i32
    %c0_i32_0 = arith.constant 0 : i32
    %c0_i32_1 = arith.constant 0 : i32
    return %c0_i32, %c0_i32_0 : i32, i32
  }
  func.func @transform_3(%arg0: i32, %arg1: i32) -> (i32, i32) {
    %c0_i32 = arith.constant 0 : i32
    %c0_i32_0 = arith.constant 0 : i32
    %c0_i32_1 = arith.constant 0 : i32
    return %c0_i32, %c0_i32_0 : i32, i32
  }
  func.func @transform_4(%arg0: i32, %arg1: i32) -> (i32, i32, i32) {
    %c0_i32 = arith.constant 0 : i32
    %c0_i32_0 = arith.constant 0 : i32
    %c0_i32_1 = arith.constant 0 : i32
    return %arg0, %c0_i32, %c0_i32_0 : i32, i32, i32
  }
  func.func @transform_5(%arg0: i32, %arg1: i32) -> (i32, i32, i32) {
    %c0_i32 = arith.constant 0 : i32
    %c0_i32_0 = arith.constant 0 : i32
    %c0_i32_1 = arith.constant 0 : i32
    return %arg0, %c0_i32, %c0_i32_0 : i32, i32, i32
  }
}

module attributes {stable_mosaic.version = 11 : i64} {
  func.func @_apply_conv_sc_kernel(%arg0: i32, %arg1: i32, %arg2: memref<1x16x8xbf16, #tpu.memory_space<vmem>>, %arg3: memref<8x256xbf16, #tpu.memory_space<vmem>>, %arg4: memref<1x128xf32, #tpu.memory_space<vmem>>, %arg5: memref<128x128xbf16, #tpu.memory_space<vmem>>, %arg6: memref<1x1x128xf32, #tpu.memory_space<vmem>>, %arg7: memref<1x1x128xf32, #tpu.memory_space<vmem>>, %arg8: memref<1x16x128xf32, #tpu.memory_space<vmem>>) attributes {dimension_semantics = [#tpu.dimension_semantics<parallel>, #tpu.dimension_semantics<parallel>], iteration_bounds = array<i64: 2, 1>, scalar_prefetch = 0 : i64, scratch_operands = 0 : i64, tpu.core_type = #tpu.core_type<tc>, window_params = [{transform_indices = @transform_0, window_bounds = array<i64: 1, 16, 8>}, {pipeline_mode = #tpu.pipeline_mode<synchronous>, transform_indices = @transform_1, window_bounds = array<i64: 8, 256>}, {pipeline_mode = #tpu.pipeline_mode<synchronous>, transform_indices = @transform_2, window_bounds = array<i64: 1, 128>}, {pipeline_mode = #tpu.pipeline_mode<synchronous>, transform_indices = @transform_3, window_bounds = array<i64: 128, 128>}, {transform_indices = @transform_4, window_bounds = array<i64: 1, 1, 128>}, {transform_indices = @transform_5, window_bounds = array<i64: 1, 1, 128>}, {transform_indices = @transform_6, window_bounds = array<i64: 1, 16, 128>}]} {
    %c0 = arith.constant 0 : index
    %c0_0 = arith.constant 0 : index
    %c0_1 = arith.constant 0 : index
    %0 = vector.load %arg2[%c0, %c0_0, %c0_1] : memref<1x16x8xbf16, #tpu.memory_space<vmem>>, vector<1x16x8xbf16>
    %1 = vector.shape_cast %0 : vector<1x16x8xbf16> to vector<16x8xbf16>
    %c0_2 = arith.constant 0 : index
    %c0_3 = arith.constant 0 : index
    %2 = vector.load %arg3[%c0_2, %c0_3] : memref<8x256xbf16, #tpu.memory_space<vmem>>, vector<8x256xbf16>
    %cst = arith.constant dense<0.000000e+00> : vector<16x256xf32>
    %3 = tpu.matmul %1, %2, %cst {dimension_numbers = #tpu.dot_dimension_numbers<[1], [0], [0], [1], [0, 0, 1, 1], [], []>} : vector<16x8xbf16>, vector<8x256xbf16>, vector<16x256xf32> -> vector<16x256xf32>
    %4 = vector.extract_strided_slice %3 {offsets = [0, 0], sizes = [16, 128], strides = [1, 1]} : vector<16x256xf32> to vector<16x128xf32>
    %c0_4 = arith.constant 0 : index
    %c0_5 = arith.constant 0 : index
    %5 = vector.load %arg4[%c0_4, %c0_5] : memref<1x128xf32, #tpu.memory_space<vmem>>, vector<1x128xf32>
    %6 = vector.broadcast %5 : vector<1x128xf32> to vector<16x128xf32>
    %7 = arith.addf %4, %6 : vector<16x128xf32>
    %cst_6 = arith.constant 0.000000e+00 : f32
    %8 = vector.broadcast %cst_6 : f32 to vector<16x128xf32>
    %9 = arith.maximumf %7, %8 : vector<16x128xf32>
    %10 = vector.extract_strided_slice %3 {offsets = [0, 128], sizes = [16, 128], strides = [1, 1]} : vector<16x256xf32> to vector<16x128xf32>
    %11 = arith.truncf %9 : vector<16x128xf32> to vector<16x128xbf16>
    %c0_7 = arith.constant 0 : index
    %c0_8 = arith.constant 0 : index
    %12 = vector.load %arg5[%c0_7, %c0_8] : memref<128x128xbf16, #tpu.memory_space<vmem>>, vector<128x128xbf16>
    %cst_9 = arith.constant dense<0.000000e+00> : vector<16x128xf32>
    %13 = tpu.matmul %11, %12, %cst_9 {dimension_numbers = #tpu.dot_dimension_numbers<[1], [0], [0], [1], [0, 0, 1, 1], [], []>} : vector<16x128xbf16>, vector<128x128xbf16>, vector<16x128xf32> -> vector<16x128xf32>
    %14 = vector.shape_cast %13 : vector<16x128xf32> to vector<1x16x128xf32>
    %15 = vector.shape_cast %10 : vector<16x128xf32> to vector<1x16x128xf32>
    %c0_10 = arith.constant 0 : index
    %c0_11 = arith.constant 0 : index
    %c0_12 = arith.constant 0 : index
    %16 = vector.load %arg6[%c0_10, %c0_11, %c0_12] : memref<1x1x128xf32, #tpu.memory_space<vmem>>, vector<1x1x128xf32>
    %17 = vector.broadcast %16 : vector<1x1x128xf32> to vector<1x16x128xf32>
    %18 = arith.mulf %14, %17 : vector<1x16x128xf32>
    %c0_13 = arith.constant 0 : index
    %c0_14 = arith.constant 0 : index
    %c0_15 = arith.constant 0 : index
    %19 = vector.load %arg7[%c0_13, %c0_14, %c0_15] : memref<1x1x128xf32, #tpu.memory_space<vmem>>, vector<1x1x128xf32>
    %20 = vector.broadcast %19 : vector<1x1x128xf32> to vector<1x16x128xf32>
    %21 = arith.addf %18, %20 : vector<1x16x128xf32>
    %22 = arith.addf %21, %15 : vector<1x16x128xf32>
    %cst_16 = arith.constant 0.000000e+00 : f32
    %23 = vector.broadcast %cst_16 : f32 to vector<1x16x128xf32>
    %24 = arith.maximumf %22, %23 : vector<1x16x128xf32>
    %c0_17 = arith.constant 0 : index
    %c0_18 = arith.constant 0 : index
    %c0_19 = arith.constant 0 : index
    %25 = vector.load %arg8[%c0_17, %c0_18, %c0_19] : memref<1x16x128xf32, #tpu.memory_space<vmem>>, vector<1x16x128xf32>
    tpu.vector_store %arg8[%c0_17, %c0_18, %c0_19], %24 {strides = array<i32>} : memref<1x16x128xf32, #tpu.memory_space<vmem>>, vector<1x16x128xf32>,
    return
  }
  func.func @transform_0(%arg0: i32, %arg1: i32) -> (i32, i32, i32) {
    %c0_i32 = arith.constant 0 : i32
    %c0_i32_0 = arith.constant 0 : i32
    return %arg0, %arg1, %c0_i32 : i32, i32, i32
  }
  func.func @transform_1(%arg0: i32, %arg1: i32) -> (i32, i32) {
    %c0_i32 = arith.constant 0 : i32
    %c0_i32_0 = arith.constant 0 : i32
    %c0_i32_1 = arith.constant 0 : i32
    return %c0_i32, %c0_i32_0 : i32, i32
  }
  func.func @transform_2(%arg0: i32, %arg1: i32) -> (i32, i32) {
    %c0_i32 = arith.constant 0 : i32
    %c0_i32_0 = arith.constant 0 : i32
    %c0_i32_1 = arith.constant 0 : i32
    return %c0_i32, %c0_i32_0 : i32, i32
  }
  func.func @transform_3(%arg0: i32, %arg1: i32) -> (i32, i32) {
    %c0_i32 = arith.constant 0 : i32
    %c0_i32_0 = arith.constant 0 : i32
    %c0_i32_1 = arith.constant 0 : i32
    return %c0_i32, %c0_i32_0 : i32, i32
  }
  func.func @transform_4(%arg0: i32, %arg1: i32) -> (i32, i32, i32) {
    %c0_i32 = arith.constant 0 : i32
    %c0_i32_0 = arith.constant 0 : i32
    %c0_i32_1 = arith.constant 0 : i32
    return %arg0, %c0_i32, %c0_i32_0 : i32, i32, i32
  }
  func.func @transform_5(%arg0: i32, %arg1: i32) -> (i32, i32, i32) {
    %c0_i32 = arith.constant 0 : i32
    %c0_i32_0 = arith.constant 0 : i32
    %c0_i32_1 = arith.constant 0 : i32
    return %arg0, %c0_i32, %c0_i32_0 : i32, i32, i32
  }
  func.func @transform_6(%arg0: i32, %arg1: i32) -> (i32, i32, i32) {
    %c0_i32 = arith.constant 0 : i32
    %c0_i32_0 = arith.constant 0 : i32
    return %arg0, %arg1, %c0_i32 : i32, i32, i32
  }
}

</mosaic_0001>

<llo_original>
// kernel: pointmlp_block.3
$region0: #{pointmlp_block.3}
  #allocation0 [shape = 'u32[]', space=smem, size = 0x4, offset = 0x4, fixed_abs, tag = 'smem constant byte address 0x4 - core index']
  #allocation1 [shape = 'u32[144,128]{1,0:T(1,128)}', space=vmem, size = 0x12000, scoped, tag = 'internal scratch']
  %s0 = inlined_call_operand.vmem [shape: bf16[2,16,8], index: 0, kind: input, shape index: {}]
  %s1 = inlined_call_operand.vmem [shape: bf16[8,128], index: 1, kind: input, shape index: {}]
  %s2 = inlined_call_operand.vmem [shape: f32[2,1,128], index: 2, kind: output, shape index: {0}]
  %s3 = inlined_call_operand.vmem [shape: f32[2,1,128], index: 3, kind: output, shape index: {1}]
  %4 = xla_tuple %s2, %s3
  %s5 = sld [smem:[#allocation0]]
  $region53: #{pointmlp_block.3} parent=0
    _
  %s7 = ssub.s32 1, %s5
  %s8 = scalar_select 0, %s7, %s5
  loop: start=0, step=1, limit=4
  $region2: #{pointmlp_block.3} parent=0 // loop_pre_header
    _
  $region3: #{pointmlp_block.3} parent=0 // loop_header
    %s10 = sphi 0, %s14
    %p11 = scmp.ge.s32.totalorder %s10, 4
    %s17 = sphi 0, %s29
    %s18 = sphi 0, %s25
    %s19 = sphi 0, %s17
    %s20 = sphi 0, %s18
    %s21 = sphi 0, %s19
    %s22 = sphi 0, %s20
    %s34 = sphi 0, %s36
    %s37 = sphi 0, %s34
    %s38 = sphi 0, %s37
    %s54 = sphi 0, %s38
    %s58 = sphi 0, %s58
    %s60 = sphi 0, %s58
    %s61 = sphi 0, %s60
    %s75 = sphi 0, %s61
    %s81 = sphi 0, %s83
    %s84 = sphi 0, %s81
    %s85 = sphi 0, %s84
    %s101 = sphi 0, %s85
    %s107 = sphi 0, %s109
    %s110 = sphi 0, %s107
    %s111 = sphi 0, %s110
    %s127 = sphi 0, %s111
  $region4: #{pointmlp_block.3} parent=0 // loop_header_branch
    %13 = sbr.rel (%p11) target = $region8
  $region5: #{pointmlp_block.3} parent=0 // loop_body
    %s15 = ssub.s32 %s10, 1
    %s16 = ssub.s32 %s10, 2
    %s23 = sadd.s32 1, %s18
    %p24 = scmp.ge.s32.totalorder %s23, 1
    %s25 = scalar_select %p24, 0, %s23
    %s26 = sadd.s32 1, %s17
    %s27 = scalar_select %p24, %s26, %s17
    %p28 = scmp.ge.s32.totalorder %s27, 2
    %s29 = scalar_select %p28, 0, %s27
    %s30 = ssub.s32 %s17, %s29
    %s31 = ssub.s32 %s18, %s25
    %s32 = sor.u32 %s30, %s31
    %p33 = scmp.eq.s32.totalorder %s32, 0
    %s35 = sadd.s32 %s34, 1
    %s36 = scalar_select %p33, %s34, %s35
    %p39 = pneg %p33
    %p40 = scmp.eq.s32.totalorder %s10, 1
    %p41 = por %p39, %p40
    %p42 = scmp.ne.s32.totalorder %s34, %s37
    %p43 = scmp.eq.s32.totalorder %s10, 0
    %p44 = por %p42, %p43
    %p45 = scmp.ne.s32.totalorder %s34, %s37
    %p46 = scmp.eq.s32.totalorder %s15, 1
    %p47 = por %p45, %p46
    %p48 = scmp.ne.s32.totalorder %s37, %s38
    %p49 = scmp.eq.s32.totalorder %s15, 0
    %p50 = por %p48, %p49
    %p51 = scmp.ne.s32.totalorder %s37, %s38
    %p52 = scmp.eq.s32.totalorder %s16, 1
    %p53 = por %p51, %p52
    %p55 = scmp.ne.s32.totalorder %s38, %s54
    %p56 = scmp.eq.s32.totalorder %s16, 0
    %p57 = por %p55, %p56
    %s59 = sadd.s32 %s58, 1
    %p62 = scmp.eq.s32.totalorder %s10, 1
    %p63 = scmp.ne.s32.totalorder %s58, %s60
    %p64 = scmp.eq.s32.totalorder %s10, 0
    %p65 = por %p63, %p64
    %p66 = scmp.ne.s32.totalorder %s58, %s60
    %p67 = scmp.eq.s32.totalorder %s15, 1
    %p68 = por %p66, %p67
    %p69 = scmp.ne.s32.totalorder %s60, %s61
    %p70 = scmp.eq.s32.totalorder %s15, 0
    %p71 = por %p69, %p70
    %p72 = scmp.ne.s32.totalorder %s60, %s61
    %p73 = scmp.eq.s32.totalorder %s16, 1
    %p74 = por %p72, %p73
    %p76 = scmp.ne.s32.totalorder %s61, %s75
    %p77 = scmp.eq.s32.totalorder %s16, 0
    %p78 = por %p76, %p77
    %s79 = ssub.s32 %s17, %s29
    %p80 = scmp.eq.s32.totalorder %s79, 0
    %s82 = sadd.s32 %s81, 1
    %s83 = scalar_select %p80, %s81, %s82
    %p86 = pneg %p80
    %p87 = scmp.eq.s32.totalorder %s10, 1
    %p88 = por %p86, %p87
    %p89 = scmp.ne.s32.totalorder %s81, %s84
    %p90 = scmp.eq.s32.totalorder %s10, 0
    %p91 = por %p89, %p90
    %p92 = scmp.ne.s32.totalorder %s81, %s84
    %p93 = scmp.eq.s32.totalorder %s15, 1
    %p94 = por %p92, %p93
    %p95 = scmp.ne.s32.totalorder %s84, %s85
    %p96 = scmp.eq.s32.totalorder %s15, 0
    %p97 = por %p95, %p96
    %p98 = scmp.ne.s32.totalorder %s84, %s85
    %p99 = scmp.eq.s32.totalorder %s16, 1
    %p100 = por %p98, %p99
    %p102 = scmp.ne.s32.totalorder %s85, %s101
    %p103 = scmp.eq.s32.totalorder %s16, 0
    %p104 = por %p102, %p103
    %s105 = ssub.s32 %s17, %s29
    %p106 = scmp.eq.s32.totalorder %s105, 0
    %s108 = sadd.s32 %s107, 1
    %s109 = scalar_select %p106, %s107, %s108
    %p112 = pneg %p106
    %p113 = scmp.eq.s32.totalorder %s10, 1
    %p114 = por %p112, %p113
    %p115 = scmp.ne.s32.totalorder %s107, %s110
    %p116 = scmp.eq.s32.totalorder %s10, 0
    %p117 = por %p115, %p116
    %p118 = scmp.ne.s32.totalorder %s107, %s110
    %p119 = scmp.eq.s32.totalorder %s15, 1
    %p120 = por %p118, %p119
    %p121 = scmp.ne.s32.totalorder %s110, %s111
    %p122 = scmp.eq.s32.totalorder %s15, 0
    %p123 = por %p121, %p122
    %p124 = scmp.ne.s32.totalorder %s110, %s111
    %p125 = scmp.eq.s32.totalorder %s16, 1
    %p126 = por %p124, %p125
    %p128 = scmp.ne.s32.totalorder %s111, %s127
    %p129 = scmp.eq.s32.totalorder %s16, 0
    %p130 = por %p128, %p129
    %p131 = scmp.le.s32.totalorder 1, %s10
    %p132 = scmp.lt.s32.totalorder %s10, 3
    %p133 = pnand %p131, %p132
    %p134 = pneg %p133
    // Predicated region
    $region9: #{pointmlp_block.3} parent=5 // pred_check
      _
    $region10: #{pointmlp_block.3} parent=5 // pred_check_branch
      %136 = sbr.rel (%p133) target = $region12
    $region11: #{pointmlp_block.3} parent=5 // pred_region
      %s137 = ssub.s32 %s10, 1
      // Predicated region
      $region13: #{pointmlp_block.3} parent=11 // pred_check
        %p138 = pneg %p71
      $region14: #{pointmlp_block.3} parent=11 // pred_check_branch
        %140 = sbr.rel (%p138) target = $region16
      $region15: #{pointmlp_block.3} parent=11 // pred_region
        _
      $region16: #{pointmlp_block.3} parent=11 // pred_fallthru
        _
    $region12: #{pointmlp_block.3} parent=5 // pred_fallthru
      _
    %p141 = scmp.lt.s32.totalorder %s10, 2
    // Predicated region
    $region17: #{pointmlp_block.3} parent=5 // pred_check
      %p142 = pneg %p141
    $region18: #{pointmlp_block.3} parent=5 // pred_check_branch
      %144 = sbr.rel (%p142) target = $region20
    $region19: #{pointmlp_block.3} parent=5 // pred_region
      // Predicated region
      $region21: #{pointmlp_block.3} parent=19 // pred_check
        %p145 = pneg %p44
      $region22: #{pointmlp_block.3} parent=19 // pred_check_branch
        %147 = sbr.rel (%p145) target = $region24
      $region23: #{pointmlp_block.3} parent=19 // pred_region
        %s148 = smul.u32 2, %s18
        %p149 = scmp.lt.s32.totalorder %s17, 1
        %s150 = scalar_select %p149, %s17, 1
        %p151 = scmp.lt.s32.totalorder %s148, 1
        %s152 = scalar_select %p151, %s148, 1
        %s153 = smul.addr %s150, 2
        %s154 = sadd.s32 %s152, %s153
        %s155 = smul.addr %s154, 4
        %s156 = scalar_lea.vmem %s0, %s155
        %s157 = smul.u32 2, %s18
      $region24: #{pointmlp_block.3} parent=19 // pred_fallthru
        _
    $region20: #{pointmlp_block.3} parent=5 // pred_fallthru
      _
    %p158 = scmp.le.s32.totalorder 1, %s10
    %p159 = scmp.lt.s32.totalorder %s10, 3
    %p160 = pnand %p158, %p159
    %p161 = pneg %p160
    // Predicated region
    $region25: #{pointmlp_block.3} parent=5 // pred_check
      _
    $region26: #{pointmlp_block.3} parent=5 // pred_check_branch
      %163 = sbr.rel (%p160) target = $region28
    $region27: #{pointmlp_block.3} parent=5 // pred_region
      %s164 = ssub.s32 %s10, 1
      %s165 = smul.u32 2, %s20
      %p166 = scmp.lt.s32.totalorder %s19, 1
      %s167 = scalar_select %p166, %s19, 1
      %p168 = scmp.lt.s32.totalorder %s165, 1
      %s169 = scalar_select %p168, %s165, 1
      %s170 = smul.addr %s167, 2
      %s171 = sadd.s32 %s169, %s170
      %s172 = smul.addr %s171, 4
      %s173 = scalar_lea.vmem %s0, %s172
      %p174 = pneg %p50
      %p175 = pneg %p47
      %p176 = pneg %p71
      %p177 = pneg %p68
      %p178 = pneg %p97
      %p179 = pneg %p94
      %p180 = scmp.lt.s32.totalorder %s19, 1
      %s181 = scalar_select %p180, %s19, 1
      %s182 = scalar_lea.vmem %s2, %s181
      %p183 = pneg %p123
      %p184 = pneg %p120
      %p185 = scmp.lt.s32.totalorder %s19, 1
      %s186 = scalar_select %p185, %s19, 1
      %s187 = scalar_lea.vmem %s3, %s186
      %s188 = smul.u32 2, %s20
      %p189 = scmp.lt.s32.totalorder %s19, 1
      %s190 = scalar_select %p189, %s19, 1
      %p191 = scmp.lt.s32.totalorder %s188, 1
      %s192 = scalar_select %p191, %s188, 1
      %s193 = smul.addr %s190, 2
      %s194 = sadd.s32 %s192, %s193
      %s195 = smul.addr %s194, 4
      %s196 = scalar_lea.vmem %s0, %s195
      %s197 = smul.u32 2, %s20
      %p198 = scmp.lt.s32.totalorder %s19, 1
      %s199 = scalar_select %p198, %s19, 1
      %s200 = scalar_lea.vmem %s2, %s199
      %p201 = scmp.lt.s32.totalorder %s19, 1
      %s202 = scalar_select %p201, %s19, 1
      %s203 = scalar_lea.vmem %s3, %s202
      %p205 = scmp.eq.s32.totalorder %s20, 0
      // Predicated region
      $region29: #{pointmlp_block.3} parent=27 // pred_check
        %p206 = pneg %p205
      $region30: #{pointmlp_block.3} parent=27 // pred_check_branch
        %208 = sbr.rel (%p206) target = $region32
      $region31: #{pointmlp_block.3} parent=27 // pred_region
        %209 = vst [vmem:[%s200] sm:$0x1] 0.0
        %210 = vst [vmem:[%s203] sm:$0x1] 0.0
      $region32: #{pointmlp_block.3} parent=27 // pred_fallthru
        _
      %v211 = vld [vmem:[%s196] sm:$0xf]
      %v212 = vld [vmem:[%s196 + $0x4] sm:$0xf]
      %v213 = vld [vmem:[%s1] sm:$0xf]
      %v216 = vunpack.c.l.b16 %v211
      %v217 = vunpack.c.l.b16 %v212
      %v218 = vpack.c.b16 %v217, %v216
      %vm219 = vcmask 64512
      %v221 = vsel %vm219, %v218, 0
      %vm223 = vcmask 1043456
      %v225 = vsel %vm223, %v213, 0
      %227 = vmatprep.subr.bf16.mxu0 0
      %228 = vmatpush1.bf16.msra.mxu0 0
      %229 = vmatprep.subr.bf16.mxu0 0
      %230 = vmatpush1.bf16.msra.mxu0 0
      %231 = vmatprep.subr.bf16.mxu0 0
      %232 = vmatpush1.bf16.msra.mxu0 0
      %233 = vmatprep.subr.bf16.mxu0 0
      %234 = vmatpush1.bf16.msra.mxu0 0
      %235 = vmatprep.subr.bf16.mxu0 0
      %236 = vmatpush1.bf16.msra.mxu0 0
      %237 = vmatprep.subr.bf16.mxu0 0
      %238 = vmatpush1.bf16.msra.mxu0 0
      %239 = vmatprep.subr.bf16.mxu0 0
      %240 = vmatpush1.bf16.msra.mxu0 0
      %241 = vmatprep.subr.bf16.mxu0 0
      %242 = vmatpush1.bf16.msra.mxu0 %v225
      %243 = vmatprep.subr.bf16.mxu0 0
      %244 = vmatpush2.bf16.msra.mxu0 0
      %245 = vmatprep.subr.bf16.mxu0 0
      %246 = vmatpush2.bf16.msra.mxu0 0
      %247 = vmatprep.subr.bf16.mxu0 0
      %248 = vmatpush2.bf16.msra.mxu0 0
      %249 = vmatprep.subr.bf16.mxu0 0
      %250 = vmatpush2.bf16.msra.mxu0 0
      %251 = vmatprep.subr.bf16.mxu0 0
      %252 = vmatpush2.bf16.msra.mxu0 0
      %253 = vmatprep.subr.bf16.mxu0 0
      %254 = vmatpush2.bf16.msra.mxu0 0
      %255 = vmatprep.subr.bf16.mxu0 0
      %256 = vmatpush2.bf16.msra.mxu0 0
      %257 = vmatprep.subr.bf16.mxu0 0
      %258 = vmatpush2.bf16.msra.mxu0 0
      %259 = vmatprep.mubr.bf16.mxu0 0
      %260 = vmatmul.mubr.bf16.gmra.mxu0 %v221
      %v261 = vpop.f32.mrf.mxu0
      %v262 = vadd.f32 0.0, %v261
      %v263 = vpop.f32.mrf.mxu0
      %v264 = vpop.f32.mrf.mxu0
      %v265 = vadd.f32 0.0, %v264
      %v266 = vpop.f32.mrf.mxu0
      %267 = vdwg.mxu0
      %v268 = vld [vmem:[%s200] sm:$0x1]
      %v269 = vadd.f32 %v262, %v265
      %v270 = vrot.slane %v269, 4
      %v271 = vadd.f32 %v269, %v270
      %v272 = vrot.slane %v271, 2
      %v273 = vadd.f32 %v271, %v272
      %v274 = vrot.slane %v273, 1
      %v275 = vadd.f32 %v273, %v274
      %v276 = vadd.f32 %v268, %v275
      %277 = vst [vmem:[%s200] sm:$0x1] %v276
      %v278 = vld [vmem:[%s203] sm:$0x1]
      %v279 = vmul.f32 %v262, %v262
      %v280 = vmul.f32 %v265, %v265
      %v281 = vadd.f32 %v279, %v280
      %v282 = vrot.slane %v281, 4
      %v283 = vadd.f32 %v281, %v282
      %v284 = vrot.slane %v283, 2
      %v285 = vadd.f32 %v283, %v284
      %v286 = vrot.slane %v285, 1
      %v287 = vadd.f32 %v285, %v286
      %v288 = vadd.f32 %v278, %v287
      %289 = vst [vmem:[%s203] sm:$0x1] %v288
      %p290 = scmp.lt.s32.totalorder %s19, 1
      %s291 = scalar_select %p290, %s19, 1
      %s292 = scalar_lea.vmem %s2, %s291
      %p293 = scmp.lt.s32.totalorder %s19, 1
      %s294 = scalar_select %p293, %s19, 1
      %s295 = scalar_lea.vmem %s3, %s294
      // Predicated region
      $region33: #{pointmlp_block.3} parent=27 // pred_check
        %p296 = pneg %p94
      $region34: #{pointmlp_block.3} parent=27 // pred_check_branch
        %298 = sbr.rel (%p296) target = $region36
      $region35: #{pointmlp_block.3} parent=27 // pred_region
        _
      $region36: #{pointmlp_block.3} parent=27 // pred_fallthru
        _
      // Predicated region
      $region37: #{pointmlp_block.3} parent=27 // pred_check
        %p299 = pneg %p120
      $region38: #{pointmlp_block.3} parent=27 // pred_check_branch
        %301 = sbr.rel (%p299) target = $region40
      $region39: #{pointmlp_block.3} parent=27 // pred_region
        _
      $region40: #{pointmlp_block.3} parent=27 // pred_fallthru
        _
    $region28: #{pointmlp_block.3} parent=5 // pred_fallthru
      _
    %p302 = scmp.le.s32.totalorder 2, %s10
    // Predicated region
    $region41: #{pointmlp_block.3} parent=5 // pred_check
      %p303 = pneg %p302
    $region42: #{pointmlp_block.3} parent=5 // pred_check_branch
      %305 = sbr.rel (%p303) target = $region44
    $region43: #{pointmlp_block.3} parent=5 // pred_region
      %s306 = ssub.s32 %s10, 2
      // Predicated region
      $region45: #{pointmlp_block.3} parent=43 // pred_check
        %p307 = pneg %p100
      $region46: #{pointmlp_block.3} parent=43 // pred_check_branch
        %309 = sbr.rel (%p307) target = $region48
      $region47: #{pointmlp_block.3} parent=43 // pred_region
        %p310 = scmp.lt.s32.totalorder %s21, 1
        %s311 = scalar_select %p310, %s21, 1
        %s312 = scalar_lea.vmem %s2, %s311
      $region48: #{pointmlp_block.3} parent=43 // pred_fallthru
        _
      // Predicated region
      $region49: #{pointmlp_block.3} parent=43 // pred_check
        %p313 = pneg %p126
      $region50: #{pointmlp_block.3} parent=43 // pred_check_branch
        %315 = sbr.rel (%p313) target = $region52
      $region51: #{pointmlp_block.3} parent=43 // pred_region
        %p316 = scmp.lt.s32.totalorder %s21, 1
        %s317 = scalar_select %p316, %s21, 1
        %s318 = scalar_lea.vmem %s3, %s317
      $region52: #{pointmlp_block.3} parent=43 // pred_fallthru
        _
    $region44: #{pointmlp_block.3} parent=5 // pred_fallthru
      _
  $region6: #{pointmlp_block.3} parent=0 // loop_footer
    %s14 = sadd.s32 1, %s10
  $region7: #{pointmlp_block.3} parent=0 // loop_footer_branch
    %9 = sbr.rel target = $region3
  $region8: #{pointmlp_block.3} parent=0 // loop_exit
    _

// kernel: pointmlp_block.4
$region0: #{pointmlp_block.4}
  #allocation0 [shape = 'u32[]', space=smem, size = 0x4, offset = 0x4, fixed_abs, tag = 'smem constant byte address 0x4 - core index']
  #allocation1 [shape = 'u32[144,128]{1,0:T(1,128)}', space=vmem, size = 0x12000, scoped, tag = 'internal scratch']
  %s0 = inlined_call_operand.vmem [shape: bf16[2,16,8], index: 0, kind: input, shape index: {}]
  %s1 = inlined_call_operand.vmem [shape: bf16[8,128], index: 1, kind: input, shape index: {}]
  %s2 = inlined_call_operand.vmem [shape: f32[1,128], index: 2, kind: input, shape index: {}]
  %s3 = inlined_call_operand.vmem [shape: bf16[128,128], index: 3, kind: input, shape index: {}]
  %s4 = inlined_call_operand.vmem [shape: f32[2,1,128], index: 4, kind: output, shape index: {0}]
  %s5 = inlined_call_operand.vmem [shape: f32[2,1,128], index: 5, kind: output, shape index: {1}]
  %6 = xla_tuple %s4, %s5
  %s7 = sld [smem:[#allocation0]]
  $region61: #{pointmlp_block.4} parent=0
    _
  %s9 = ssub.s32 1, %s7
  %s10 = scalar_select 0, %s9, %s7
  loop: start=0, step=1, limit=4
  $region2: #{pointmlp_block.4} parent=0 // loop_pre_header
    _
  $region3: #{pointmlp_block.4} parent=0 // loop_header
    %s12 = sphi 0, %s16
    %p13 = scmp.ge.s32.totalorder %s12, 4
    %s19 = sphi 0, %s31
    %s20 = sphi 0, %s27
    %s21 = sphi 0, %s19
    %s22 = sphi 0, %s20
    %s23 = sphi 0, %s21
    %s24 = sphi 0, %s22
    %s36 = sphi 0, %s38
    %s39 = sphi 0, %s36
    %s40 = sphi 0, %s39
    %s56 = sphi 0, %s40
    %s60 = sphi 0, %s60
    %s62 = sphi 0, %s60
    %s63 = sphi 0, %s62
    %s77 = sphi 0, %s63
    %s81 = sphi 0, %s81
    %s83 = sphi 0, %s81
    %s84 = sphi 0, %s83
    %s98 = sphi 0, %s84
    %s102 = sphi 0, %s102
    %s104 = sphi 0, %s102
    %s105 = sphi 0, %s104
    %s119 = sphi 0, %s105
    %s125 = sphi 0, %s127
    %s128 = sphi 0, %s125
    %s129 = sphi 0, %s128
    %s145 = sphi 0, %s129
    %s151 = sphi 0, %s153
    %s154 = sphi 0, %s151
    %s155 = sphi 0, %s154
    %s171 = sphi 0, %s155
  $region4: #{pointmlp_block.4} parent=0 // loop_header_branch
    %15 = sbr.rel (%p13) target = $region8
  $region5: #{pointmlp_block.4} parent=0 // loop_body
    %s17 = ssub.s32 %s12, 1
    %s18 = ssub.s32 %s12, 2
    %s25 = sadd.s32 1, %s20
    %p26 = scmp.ge.s32.totalorder %s25, 1
    %s27 = scalar_select %p26, 0, %s25
    %s28 = sadd.s32 1, %s19
    %s29 = scalar_select %p26, %s28, %s19
    %p30 = scmp.ge.s32.totalorder %s29, 2
    %s31 = scalar_select %p30, 0, %s29
    %s32 = ssub.s32 %s19, %s31
    %s33 = ssub.s32 %s20, %s27
    %s34 = sor.u32 %s32, %s33
    %p35 = scmp.eq.s32.totalorder %s34, 0
    %s37 = sadd.s32 %s36, 1
    %s38 = scalar_select %p35, %s36, %s37
    %p41 = pneg %p35
    %p42 = scmp.eq.s32.totalorder %s12, 1
    %p43 = por %p41, %p42
    %p44 = scmp.ne.s32.totalorder %s36, %s39
    %p45 = scmp.eq.s32.totalorder %s12, 0
    %p46 = por %p44, %p45
    %p47 = scmp.ne.s32.totalorder %s36, %s39
    %p48 = scmp.eq.s32.totalorder %s17, 1
    %p49 = por %p47, %p48
    %p50 = scmp.ne.s32.totalorder %s39, %s40
    %p51 = scmp.eq.s32.totalorder %s17, 0
    %p52 = por %p50, %p51
    %p53 = scmp.ne.s32.totalorder %s39, %s40
    %p54 = scmp.eq.s32.totalorder %s18, 1
    %p55 = por %p53, %p54
    %p57 = scmp.ne.s32.totalorder %s40, %s56
    %p58 = scmp.eq.s32.totalorder %s18, 0
    %p59 = por %p57, %p58
    %s61 = sadd.s32 %s60, 1
    %p64 = scmp.eq.s32.totalorder %s12, 1
    %p65 = scmp.ne.s32.totalorder %s60, %s62
    %p66 = scmp.eq.s32.totalorder %s12, 0
    %p67 = por %p65, %p66
    %p68 = scmp.ne.s32.totalorder %s60, %s62
    %p69 = scmp.eq.s32.totalorder %s17, 1
    %p70 = por %p68, %p69
    %p71 = scmp.ne.s32.totalorder %s62, %s63
    %p72 = scmp.eq.s32.totalorder %s17, 0
    %p73 = por %p71, %p72
    %p74 = scmp.ne.s32.totalorder %s62, %s63
    %p75 = scmp.eq.s32.totalorder %s18, 1
    %p76 = por %p74, %p75
    %p78 = scmp.ne.s32.totalorder %s63, %s77
    %p79 = scmp.eq.s32.totalorder %s18, 0
    %p80 = por %p78, %p79
    %s82 = sadd.s32 %s81, 1
    %p85 = scmp.eq.s32.totalorder %s12, 1
    %p86 = scmp.ne.s32.totalorder %s81, %s83
    %p87 = scmp.eq.s32.totalorder %s12, 0
    %p88 = por %p86, %p87
    %p89 = scmp.ne.s32.totalorder %s81, %s83
    %p90 = scmp.eq.s32.totalorder %s17, 1
    %p91 = por %p89, %p90
    %p92 = scmp.ne.s32.totalorder %s83, %s84
    %p93 = scmp.eq.s32.totalorder %s17, 0
    %p94 = por %p92, %p93
    %p95 = scmp.ne.s32.totalorder %s83, %s84
    %p96 = scmp.eq.s32.totalorder %s18, 1
    %p97 = por %p95, %p96
    %p99 = scmp.ne.s32.totalorder %s84, %s98
    %p100 = scmp.eq.s32.totalorder %s18, 0
    %p101 = por %p99, %p100
    %s103 = sadd.s32 %s102, 1
    %p106 = scmp.eq.s32.totalorder %s12, 1
    %p107 = scmp.ne.s32.totalorder %s102, %s104
    %p108 = scmp.eq.s32.totalorder %s12, 0
    %p109 = por %p107, %p108
    %p110 = scmp.ne.s32.totalorder %s102, %s104
    %p111 = scmp.eq.s32.totalorder %s17, 1
    %p112 = por %p110, %p111
    %p113 = scmp.ne.s32.totalorder %s104, %s105
    %p114 = scmp.eq.s32.totalorder %s17, 0
    %p115 = por %p113, %p114
    %p116 = scmp.ne.s32.totalorder %s104, %s105
    %p117 = scmp.eq.s32.totalorder %s18, 1
    %p118 = por %p116, %p117
    %p120 = scmp.ne.s32.totalorder %s105, %s119
    %p121 = scmp.eq.s32.totalorder %s18, 0
    %p122 = por %p120, %p121
    %s123 = ssub.s32 %s19, %s31
    %p124 = scmp.eq.s32.totalorder %s123, 0
    %s126 = sadd.s32 %s125, 1
    %s127 = scalar_select %p124, %s125, %s126
    %p130 = pneg %p124
    %p131 = scmp.eq.s32.totalorder %s12, 1
    %p132 = por %p130, %p131
    %p133 = scmp.ne.s32.totalorder %s125, %s128
    %p134 = scmp.eq.s32.totalorder %s12, 0
    %p135 = por %p133, %p134
    %p136 = scmp.ne.s32.totalorder %s125, %s128
    %p137 = scmp.eq.s32.totalorder %s17, 1
    %p138 = por %p136, %p137
    %p139 = scmp.ne.s32.totalorder %s128, %s129
    %p140 = scmp.eq.s32.totalorder %s17, 0
    %p141 = por %p139, %p140
    %p142 = scmp.ne.s32.totalorder %s128, %s129
    %p143 = scmp.eq.s32.totalorder %s18, 1
    %p144 = por %p142, %p143
    %p146 = scmp.ne.s32.totalorder %s129, %s145
    %p147 = scmp.eq.s32.totalorder %s18, 0
    %p148 = por %p146, %p147
    %s149 = ssub.s32 %s19, %s31
    %p150 = scmp.eq.s32.totalorder %s149, 0
    %s152 = sadd.s32 %s151, 1
    %s153 = scalar_select %p150, %s151, %s152
    %p156 = pneg %p150
    %p157 = scmp.eq.s32.totalorder %s12, 1
    %p158 = por %p156, %p157
    %p159 = scmp.ne.s32.totalorder %s151, %s154
    %p160 = scmp.eq.s32.totalorder %s12, 0
    %p161 = por %p159, %p160
    %p162 = scmp.ne.s32.totalorder %s151, %s154
    %p163 = scmp.eq.s32.totalorder %s17, 1
    %p164 = por %p162, %p163
    %p165 = scmp.ne.s32.totalorder %s154, %s155
    %p166 = scmp.eq.s32.totalorder %s17, 0
    %p167 = por %p165, %p166
    %p168 = scmp.ne.s32.totalorder %s154, %s155
    %p169 = scmp.eq.s32.totalorder %s18, 1
    %p170 = por %p168, %p169
    %p172 = scmp.ne.s32.totalorder %s155, %s171
    %p173 = scmp.eq.s32.totalorder %s18, 0
    %p174 = por %p172, %p173
    %p175 = scmp.le.s32.totalorder 1, %s12
    %p176 = scmp.lt.s32.totalorder %s12, 3
    %p177 = pnand %p175, %p176
    %p178 = pneg %p177
    // Predicated region
    $region9: #{pointmlp_block.4} parent=5 // pred_check
      _
    $region10: #{pointmlp_block.4} parent=5 // pred_check_branch
      %180 = sbr.rel (%p177) target = $region12
    $region11: #{pointmlp_block.4} parent=5 // pred_region
      %s181 = ssub.s32 %s12, 1
      // Predicated region
      $region13: #{pointmlp_block.4} parent=11 // pred_check
        %p182 = pneg %p73
      $region14: #{pointmlp_block.4} parent=11 // pred_check_branch
        %184 = sbr.rel (%p182) target = $region16
      $region15: #{pointmlp_block.4} parent=11 // pred_region
        _
      $region16: #{pointmlp_block.4} parent=11 // pred_fallthru
        _
      // Predicated region
      $region17: #{pointmlp_block.4} parent=11 // pred_check
        %p185 = pneg %p94
      $region18: #{pointmlp_block.4} parent=11 // pred_check_branch
        %187 = sbr.rel (%p185) target = $region20
      $region19: #{pointmlp_block.4} parent=11 // pred_region
        _
      $region20: #{pointmlp_block.4} parent=11 // pred_fallthru
        _
      // Predicated region
      $region21: #{pointmlp_block.4} parent=11 // pred_check
        %p188 = pneg %p115
      $region22: #{pointmlp_block.4} parent=11 // pred_check_branch
        %190 = sbr.rel (%p188) target = $region24
      $region23: #{pointmlp_block.4} parent=11 // pred_region
        _
      $region24: #{pointmlp_block.4} parent=11 // pred_fallthru
        _
    $region12: #{pointmlp_block.4} parent=5 // pred_fallthru
      _
    %p191 = scmp.lt.s32.totalorder %s12, 2
    // Predicated region
    $region25: #{pointmlp_block.4} parent=5 // pred_check
      %p192 = pneg %p191
    $region26: #{pointmlp_block.4} parent=5 // pred_check_branch
      %194 = sbr.rel (%p192) target = $region28
    $region27: #{pointmlp_block.4} parent=5 // pred_region
      // Predicated region
      $region29: #{pointmlp_block.4} parent=27 // pred_check
        %p195 = pneg %p46
      $region30: #{pointmlp_block.4} parent=27 // pred_check_branch
        %197 = sbr.rel (%p195) target = $region32
      $region31: #{pointmlp_block.4} parent=27 // pred_region
        %s198 = smul.u32 2, %s20
        %p199 = scmp.lt.s32.totalorder %s19, 1
        %s200 = scalar_select %p199, %s19, 1
        %p201 = scmp.lt.s32.totalorder %s198, 1
        %s202 = scalar_select %p201, %s198, 1
        %s203 = smul.addr %s200, 2
        %s204 = sadd.s32 %s202, %s203
        %s205 = smul.addr %s204, 4
        %s206 = scalar_lea.vmem %s0, %s205
        %s207 = smul.u32 2, %s20
      $region32: #{pointmlp_block.4} parent=27 // pred_fallthru
        _
    $region28: #{pointmlp_block.4} parent=5 // pred_fallthru
      _
    %p208 = scmp.le.s32.totalorder 1, %s12
    %p209 = scmp.lt.s32.totalorder %s12, 3
    %p210 = pnand %p208, %p209
    %p211 = pneg %p210
    // Predicated region
    $region33: #{pointmlp_block.4} parent=5 // pred_check
      _
    $region34: #{pointmlp_block.4} parent=5 // pred_check_branch
      %213 = sbr.rel (%p210) target = $region36
    $region35: #{pointmlp_block.4} parent=5 // pred_region
      %s214 = ssub.s32 %s12, 1
      %s215 = smul.u32 2, %s22
      %p216 = scmp.lt.s32.totalorder %s21, 1
      %s217 = scalar_select %p216, %s21, 1
      %p218 = scmp.lt.s32.totalorder %s215, 1
      %s219 = scalar_select %p218, %s215, 1
      %s220 = smul.addr %s217, 2
      %s221 = sadd.s32 %s219, %s220
      %s222 = smul.addr %s221, 4
      %s223 = scalar_lea.vmem %s0, %s222
      %p224 = pneg %p52
      %p225 = pneg %p49
      %p226 = pneg %p73
      %p227 = pneg %p70
      %p228 = pneg %p94
      %p229 = pneg %p91
      %p230 = pneg %p115
      %p231 = pneg %p112
      %p232 = pneg %p141
      %p233 = pneg %p138
      %p234 = scmp.lt.s32.totalorder %s21, 1
      %s235 = scalar_select %p234, %s21, 1
      %s236 = scalar_lea.vmem %s4, %s235
      %p237 = pneg %p167
      %p238 = pneg %p164
      %p239 = scmp.lt.s32.totalorder %s21, 1
      %s240 = scalar_select %p239, %s21, 1
      %s241 = scalar_lea.vmem %s5, %s240
      %s242 = smul.u32 2, %s22
      %p243 = scmp.lt.s32.totalorder %s21, 1
      %s244 = scalar_select %p243, %s21, 1
      %p245 = scmp.lt.s32.totalorder %s242, 1
      %s246 = scalar_select %p245, %s242, 1
      %s247 = smul.addr %s244, 2
      %s248 = sadd.s32 %s246, %s247
      %s249 = smul.addr %s248, 4
      %s250 = scalar_lea.vmem %s0, %s249
      %s251 = smul.u32 2, %s22
      %p252 = scmp.lt.s32.totalorder %s21, 1
      %s253 = scalar_select %p252, %s21, 1
      %s254 = scalar_lea.vmem %s4, %s253
      %p255 = scmp.lt.s32.totalorder %s21, 1
      %s256 = scalar_select %p255, %s21, 1
      %s257 = scalar_lea.vmem %s5, %s256
      %p259 = scmp.eq.s32.totalorder %s22, 0
      // Predicated region
      $region37: #{pointmlp_block.4} parent=35 // pred_check
        %p260 = pneg %p259
      $region38: #{pointmlp_block.4} parent=35 // pred_check_branch
        %262 = sbr.rel (%p260) target = $region40
      $region39: #{pointmlp_block.4} parent=35 // pred_region
        %263 = vst [vmem:[%s254] sm:$0x1] 0.0
        %264 = vst [vmem:[%s257] sm:$0x1] 0.0
      $region40: #{pointmlp_block.4} parent=35 // pred_fallthru
        _
      %v265 = vld [vmem:[%s250] sm:$0xf]
      %v266 = vld [vmem:[%s250 + $0x4] sm:$0xf]
      %v267 = vld [vmem:[%s1] sm:$0xf]
      %v268 = vld [vmem:[%s2] sm:$0x1]
      %v270 = vlaneseq
      %v271 = vshrl.u32 %v270, 7
      %v272 = vsub.s32 0, %v271
      %v273 = vrot.slane %v268, %v272
      %v277 = vunpack.c.l.b16 %v265
      %v278 = vunpack.c.l.b16 %v266
      %v279 = vpack.c.b16 %v278, %v277
      %vm280 = vcmask 64512
      %v282 = vsel %vm280, %v279, 0
      %vm284 = vcmask 1043456
      %v286 = vsel %vm284, %v267, 0
      %288 = vmatprep.subr.bf16.mxu0 0
      %289 = vmatpush1.bf16.msra.mxu0 0
      %290 = vmatprep.subr.bf16.mxu0 0
      %291 = vmatpush1.bf16.msra.mxu0 0
      %292 = vmatprep.subr.bf16.mxu0 0
      %293 = vmatpush1.bf16.msra.mxu0 0
      %294 = vmatprep.subr.bf16.mxu0 0
      %295 = vmatpush1.bf16.msra.mxu0 0
      %296 = vmatprep.subr.bf16.mxu0 0
      %297 = vmatpush1.bf16.msra.mxu0 0
      %298 = vmatprep.subr.bf16.mxu0 0
      %299 = vmatpush1.bf16.msra.mxu0 0
      %300 = vmatprep.subr.bf16.mxu0 0
      %301 = vmatpush1.bf16.msra.mxu0 0
      %302 = vmatprep.subr.bf16.mxu0 0
      %303 = vmatpush1.bf16.msra.mxu0 %v286
      %304 = vmatprep.subr.bf16.mxu0 0
      %305 = vmatpush2.bf16.msra.mxu0 0
      %306 = vmatprep.subr.bf16.mxu0 0
      %307 = vmatpush2.bf16.msra.mxu0 0
      %308 = vmatprep.subr.bf16.mxu0 0
      %309 = vmatpush2.bf16.msra.mxu0 0
      %310 = vmatprep.subr.bf16.mxu0 0
      %311 = vmatpush2.bf16.msra.mxu0 0
      %312 = vmatprep.subr.bf16.mxu0 0
      %313 = vmatpush2.bf16.msra.mxu0 0
      %314 = vmatprep.subr.bf16.mxu0 0
      %315 = vmatpush2.bf16.msra.mxu0 0
      %316 = vmatprep.subr.bf16.mxu0 0
      %317 = vmatpush2.bf16.msra.mxu0 0
      %318 = vmatprep.subr.bf16.mxu0 0
      %319 = vmatpush2.bf16.msra.mxu0 0
      %320 = vmatprep.mubr.bf16.mxu0 0
      %321 = vmatmul.mubr.bf16.gmra.mxu0 %v282
      %v322 = vpop.f32.mrf.mxu0
      %v323 = vadd.f32 %v273, %v322
      %v324 = vpop.f32.mrf.mxu0
      %v325 = vpop.f32.mrf.mxu0
      %v326 = vadd.f32 %v273, %v325
      %v327 = vpop.f32.mrf.mxu0
      %328 = vdwg.mxu0
      %v329 = vmax.f32 %v323, 0.0
      %v330 = vmax.f32 %v326, 0.0
      %v331 = vpack.c.bf16 %v330, %v329
      %v332 = vld [vmem:[%s3] sm:$0xf]
      %v333 = vld [vmem:[%s3 + $0x4] sm:$0xf]
      %v334 = vld [vmem:[%s3 + $0x8] sm:$0xf]
      %v335 = vld [vmem:[%s3 + $0xc] sm:$0xf]
      %v336 = vld [vmem:[%s3 + $0x10] sm:$0xf]
      %v337 = vld [vmem:[%s3 + $0x14] sm:$0xf]
      %v338 = vld [vmem:[%s3 + $0x18] sm:$0xf]
      %v339 = vld [vmem:[%s3 + $0x1c] sm:$0xf]
      %v340 = vld [vmem:[%s3 + $0x20] sm:$0xf]
      %v341 = vld [vmem:[%s3 + $0x24] sm:$0xf]
      %v342 = vld [vmem:[%s3 + $0x28] sm:$0xf]
      %v343 = vld [vmem:[%s3 + $0x2c] sm:$0xf]
      %v344 = vld [vmem:[%s3 + $0x30] sm:$0xf]
      %v345 = vld [vmem:[%s3 + $0x34] sm:$0xf]
      %v346 = vld [vmem:[%s3 + $0x38] sm:$0xf]
      %v347 = vld [vmem:[%s3 + $0x3c] sm:$0xf]
      %v364 = vunpack.c.l.b16 %v332
      %v365 = vunpack.c.l.b16 %v333
      %v366 = vunpack.c.l.b16 %v334
      %v367 = vunpack.c.l.b16 %v335
      %v368 = vunpack.c.l.b16 %v336
      %v369 = vunpack.c.l.b16 %v337
      %v370 = vunpack.c.l.b16 %v338
      %v371 = vunpack.c.l.b16 %v339
      %v372 = vunpack.c.l.b16 %v340
      %v373 = vunpack.c.l.b16 %v341
      %v374 = vunpack.c.l.b16 %v342
      %v375 = vunpack.c.l.b16 %v343
      %v376 = vunpack.c.l.b16 %v344
      %v377 = vunpack.c.l.b16 %v345
      %v378 = vunpack.c.l.b16 %v346
      %v379 = vunpack.c.l.b16 %v347
      %v380 = vpack.c.b16 %v365, %v364
      %v381 = vpack.c.b16 %v367, %v366
      %v382 = vpack.c.b16 %v369, %v368
      %v383 = vpack.c.b16 %v371, %v370
      %v384 = vpack.c.b16 %v373, %v372
      %v385 = vpack.c.b16 %v375, %v374
      %v386 = vpack.c.b16 %v377, %v376
      %v387 = vpack.c.b16 %v379, %v378
      %396 = vmatprep.subr.bf16.mxu0 0
      %397 = vmatpush1.bf16.msra.mxu0 %v387
      %398 = vmatprep.subr.bf16.mxu0 0
      %399 = vmatpush1.bf16.msra.mxu0 %v386
      %400 = vmatprep.subr.bf16.mxu0 0
      %401 = vmatpush1.bf16.msra.mxu0 %v385
      %402 = vmatprep.subr.bf16.mxu0 0
      %403 = vmatpush1.bf16.msra.mxu0 %v384
      %404 = vmatprep.subr.bf16.mxu0 0
      %405 = vmatpush1.bf16.msra.mxu0 %v383
      %406 = vmatprep.subr.bf16.mxu0 0
      %407 = vmatpush1.bf16.msra.mxu0 %v382
      %408 = vmatprep.subr.bf16.mxu0 0
      %409 = vmatpush1.bf16.msra.mxu0 %v381
      %410 = vmatprep.subr.bf16.mxu0 0
      %411 = vmatpush1.bf16.msra.mxu0 %v380
      %412 = vmatprep.subr.bf16.mxu0 0
      %413 = vmatpush2.bf16.msra.mxu0 0
      %414 = vmatprep.subr.bf16.mxu0 0
      %415 = vmatpush2.bf16.msra.mxu0 0
      %416 = vmatprep.subr.bf16.mxu0 0
      %417 = vmatpush2.bf16.msra.mxu0 0
      %418 = vmatprep.subr.bf16.mxu0 0
      %419 = vmatpush2.bf16.msra.mxu0 0
      %420 = vmatprep.subr.bf16.mxu0 0
      %421 = vmatpush2.bf16.msra.mxu0 0
      %422 = vmatprep.subr.bf16.mxu0 0
      %423 = vmatpush2.bf16.msra.mxu0 0
      %424 = vmatprep.subr.bf16.mxu0 0
      %425 = vmatpush2.bf16.msra.mxu0 0
      %426 = vmatprep.subr.bf16.mxu0 0
      %427 = vmatpush2.bf16.msra.mxu0 0
      %428 = vmatprep.mubr.bf16.mxu0 0
      %429 = vmatmul.mubr.bf16.gmra.mxu0 %v331
      %v430 = vpop.f32.mrf.mxu0
      %v431 = vadd.f32 0.0, %v430
      %v432 = vpop.f32.mrf.mxu0
      %v433 = vpop.f32.mrf.mxu0
      %v434 = vadd.f32 0.0, %v433
      %v435 = vpop.f32.mrf.mxu0
      %436 = vdwg.mxu0
      %v437 = vld [vmem:[%s254] sm:$0x1]
      %v438 = vadd.f32 %v431, %v434
      %v439 = vrot.slane %v438, 4
      %v440 = vadd.f32 %v438, %v439
      %v441 = vrot.slane %v440, 2
      %v442 = vadd.f32 %v440, %v441
      %v443 = vrot.slane %v442, 1
      %v444 = vadd.f32 %v442, %v443
      %v445 = vadd.f32 %v437, %v444
      %446 = vst [vmem:[%s254] sm:$0x1] %v445
      %v447 = vld [vmem:[%s257] sm:$0x1]
      %v448 = vmul.f32 %v431, %v431
      %v449 = vmul.f32 %v434, %v434
      %v450 = vadd.f32 %v448, %v449
      %v451 = vrot.slane %v450, 4
      %v452 = vadd.f32 %v450, %v451
      %v453 = vrot.slane %v452, 2
      %v454 = vadd.f32 %v452, %v453
      %v455 = vrot.slane %v454, 1
      %v456 = vadd.f32 %v454, %v455
      %v457 = vadd.f32 %v447, %v456
      %458 = vst [vmem:[%s257] sm:$0x1] %v457
      %p459 = scmp.lt.s32.totalorder %s21, 1
      %s460 = scalar_select %p459, %s21, 1
      %s461 = scalar_lea.vmem %s4, %s460
      %p462 = scmp.lt.s32.totalorder %s21, 1
      %s463 = scalar_select %p462, %s21, 1
      %s464 = scalar_lea.vmem %s5, %s463
      // Predicated region
      $region41: #{pointmlp_block.4} parent=35 // pred_check
        %p465 = pneg %p138
      $region42: #{pointmlp_block.4} parent=35 // pred_check_branch
        %467 = sbr.rel (%p465) target = $region44
      $region43: #{pointmlp_block.4} parent=35 // pred_region
        _
      $region44: #{pointmlp_block.4} parent=35 // pred_fallthru
        _
      // Predicated region
      $region45: #{pointmlp_block.4} parent=35 // pred_check
        %p468 = pneg %p164
      $region46: #{pointmlp_block.4} parent=35 // pred_check_branch
        %470 = sbr.rel (%p468) target = $region48
      $region47: #{pointmlp_block.4} parent=35 // pred_region
        _
      $region48: #{pointmlp_block.4} parent=35 // pred_fallthru
        _
    $region36: #{pointmlp_block.4} parent=5 // pred_fallthru
      _
    %p471 = scmp.le.s32.totalorder 2, %s12
    // Predicated region
    $region49: #{pointmlp_block.4} parent=5 // pred_check
      %p472 = pneg %p471
    $region50: #{pointmlp_block.4} parent=5 // pred_check_branch
      %474 = sbr.rel (%p472) target = $region52
    $region51: #{pointmlp_block.4} parent=5 // pred_region
      %s475 = ssub.s32 %s12, 2
      // Predicated region
      $region53: #{pointmlp_block.4} parent=51 // pred_check
        %p476 = pneg %p144
      $region54: #{pointmlp_block.4} parent=51 // pred_check_branch
        %478 = sbr.rel (%p476) target = $region56
      $region55: #{pointmlp_block.4} parent=51 // pred_region
        %p479 = scmp.lt.s32.totalorder %s23, 1
        %s480 = scalar_select %p479, %s23, 1
        %s481 = scalar_lea.vmem %s4, %s480
      $region56: #{pointmlp_block.4} parent=51 // pred_fallthru
        _
      // Predicated region
      $region57: #{pointmlp_block.4} parent=51 // pred_check
        %p482 = pneg %p170
      $region58: #{pointmlp_block.4} parent=51 // pred_check_branch
        %484 = sbr.rel (%p482) target = $region60
      $region59: #{pointmlp_block.4} parent=51 // pred_region
        %p485 = scmp.lt.s32.totalorder %s23, 1
        %s486 = scalar_select %p485, %s23, 1
        %s487 = scalar_lea.vmem %s5, %s486
      $region60: #{pointmlp_block.4} parent=51 // pred_fallthru
        _
    $region52: #{pointmlp_block.4} parent=5 // pred_fallthru
      _
  $region6: #{pointmlp_block.4} parent=0 // loop_footer
    %s16 = sadd.s32 1, %s12
  $region7: #{pointmlp_block.4} parent=0 // loop_footer_branch
    %11 = sbr.rel target = $region3
  $region8: #{pointmlp_block.4} parent=0 // loop_exit
    _

// kernel: pointmlp_block.5
$region0: #{pointmlp_block.5}
  #allocation0 [shape = 'u32[]', space=smem, size = 0x4, offset = 0x4, fixed_abs, tag = 'smem constant byte address 0x4 - core index']
  #allocation1 [shape = 'u32[144,128]{1,0:T(1,128)}', space=vmem, size = 0x12000, scoped, tag = 'internal scratch']
  %s0 = inlined_call_operand.vmem [shape: bf16[2,16,8], index: 0, kind: input, shape index: {}]
  %s1 = inlined_call_operand.vmem [shape: bf16[8,256], index: 1, kind: input, shape index: {}]
  %s2 = inlined_call_operand.vmem [shape: f32[1,128], index: 2, kind: input, shape index: {}]
  %s3 = inlined_call_operand.vmem [shape: bf16[128,128], index: 3, kind: input, shape index: {}]
  %s4 = inlined_call_operand.vmem [shape: f32[2,1,128], index: 4, kind: input, shape index: {}]
  %s5 = inlined_call_operand.vmem [shape: f32[2,1,128], index: 5, kind: input, shape index: {}]
  %s6 = inlined_call_operand.vmem [shape: f32[2,16,128], index: 6, kind: output, shape index: {}]
  %s7 = sld [smem:[#allocation0]]
  $region57: #{pointmlp_block.5} parent=0
    _
  %s9 = ssub.s32 1, %s7
  %s10 = scalar_select 0, %s9, %s7
  loop: start=0, step=1, limit=4
  $region2: #{pointmlp_block.5} parent=0 // loop_pre_header
    _
  $region3: #{pointmlp_block.5} parent=0 // loop_header
    %s12 = sphi 0, %s16
    %p13 = scmp.ge.s32.totalorder %s12, 4
    %s19 = sphi 0, %s31
    %s20 = sphi 0, %s27
    %s21 = sphi 0, %s19
    %s22 = sphi 0, %s20
    %s23 = sphi 0, %s21
    %s24 = sphi 0, %s22
    %s36 = sphi 0, %s38
    %s39 = sphi 0, %s36
    %s40 = sphi 0, %s39
    %s56 = sphi 0, %s40
    %s60 = sphi 0, %s60
    %s62 = sphi 0, %s60
    %s63 = sphi 0, %s62
    %s77 = sphi 0, %s63
    %s81 = sphi 0, %s81
    %s83 = sphi 0, %s81
    %s84 = sphi 0, %s83
    %s98 = sphi 0, %s84
    %s102 = sphi 0, %s102
    %s104 = sphi 0, %s102
    %s105 = sphi 0, %s104
    %s119 = sphi 0, %s105
    %s125 = sphi 0, %s127
    %s128 = sphi 0, %s125
    %s129 = sphi 0, %s128
    %s145 = sphi 0, %s129
    %s151 = sphi 0, %s153
    %s154 = sphi 0, %s151
    %s155 = sphi 0, %s154
    %s171 = sphi 0, %s155
    %s179 = sphi 0, %s181
    %s182 = sphi 0, %s179
    %s183 = sphi 0, %s182
    %s199 = sphi 0, %s183
  $region4: #{pointmlp_block.5} parent=0 // loop_header_branch
    %15 = sbr.rel (%p13) target = $region8
  $region5: #{pointmlp_block.5} parent=0 // loop_body
    %s17 = ssub.s32 %s12, 1
    %s18 = ssub.s32 %s12, 2
    %s25 = sadd.s32 1, %s20
    %p26 = scmp.ge.s32.totalorder %s25, 1
    %s27 = scalar_select %p26, 0, %s25
    %s28 = sadd.s32 1, %s19
    %s29 = scalar_select %p26, %s28, %s19
    %p30 = scmp.ge.s32.totalorder %s29, 2
    %s31 = scalar_select %p30, 0, %s29
    %s32 = ssub.s32 %s19, %s31
    %s33 = ssub.s32 %s20, %s27
    %s34 = sor.u32 %s32, %s33
    %p35 = scmp.eq.s32.totalorder %s34, 0
    %s37 = sadd.s32 %s36, 1
    %s38 = scalar_select %p35, %s36, %s37
    %p41 = pneg %p35
    %p42 = scmp.eq.s32.totalorder %s12, 1
    %p43 = por %p41, %p42
    %p44 = scmp.ne.s32.totalorder %s36, %s39
    %p45 = scmp.eq.s32.totalorder %s12, 0
    %p46 = por %p44, %p45
    %p47 = scmp.ne.s32.totalorder %s36, %s39
    %p48 = scmp.eq.s32.totalorder %s17, 1
    %p49 = por %p47, %p48
    %p50 = scmp.ne.s32.totalorder %s39, %s40
    %p51 = scmp.eq.s32.totalorder %s17, 0
    %p52 = por %p50, %p51
    %p53 = scmp.ne.s32.totalorder %s39, %s40
    %p54 = scmp.eq.s32.totalorder %s18, 1
    %p55 = por %p53, %p54
    %p57 = scmp.ne.s32.totalorder %s40, %s56
    %p58 = scmp.eq.s32.totalorder %s18, 0
    %p59 = por %p57, %p58
    %s61 = sadd.s32 %s60, 1
    %p64 = scmp.eq.s32.totalorder %s12, 1
    %p65 = scmp.ne.s32.totalorder %s60, %s62
    %p66 = scmp.eq.s32.totalorder %s12, 0
    %p67 = por %p65, %p66
    %p68 = scmp.ne.s32.totalorder %s60, %s62
    %p69 = scmp.eq.s32.totalorder %s17, 1
    %p70 = por %p68, %p69
    %p71 = scmp.ne.s32.totalorder %s62, %s63
    %p72 = scmp.eq.s32.totalorder %s17, 0
    %p73 = por %p71, %p72
    %p74 = scmp.ne.s32.totalorder %s62, %s63
    %p75 = scmp.eq.s32.totalorder %s18, 1
    %p76 = por %p74, %p75
    %p78 = scmp.ne.s32.totalorder %s63, %s77
    %p79 = scmp.eq.s32.totalorder %s18, 0
    %p80 = por %p78, %p79
    %s82 = sadd.s32 %s81, 1
    %p85 = scmp.eq.s32.totalorder %s12, 1
    %p86 = scmp.ne.s32.totalorder %s81, %s83
    %p87 = scmp.eq.s32.totalorder %s12, 0
    %p88 = por %p86, %p87
    %p89 = scmp.ne.s32.totalorder %s81, %s83
    %p90 = scmp.eq.s32.totalorder %s17, 1
    %p91 = por %p89, %p90
    %p92 = scmp.ne.s32.totalorder %s83, %s84
    %p93 = scmp.eq.s32.totalorder %s17, 0
    %p94 = por %p92, %p93
    %p95 = scmp.ne.s32.totalorder %s83, %s84
    %p96 = scmp.eq.s32.totalorder %s18, 1
    %p97 = por %p95, %p96
    %p99 = scmp.ne.s32.totalorder %s84, %s98
    %p100 = scmp.eq.s32.totalorder %s18, 0
    %p101 = por %p99, %p100
    %s103 = sadd.s32 %s102, 1
    %p106 = scmp.eq.s32.totalorder %s12, 1
    %p107 = scmp.ne.s32.totalorder %s102, %s104
    %p108 = scmp.eq.s32.totalorder %s12, 0
    %p109 = por %p107, %p108
    %p110 = scmp.ne.s32.totalorder %s102, %s104
    %p111 = scmp.eq.s32.totalorder %s17, 1
    %p112 = por %p110, %p111
    %p113 = scmp.ne.s32.totalorder %s104, %s105
    %p114 = scmp.eq.s32.totalorder %s17, 0
    %p115 = por %p113, %p114
    %p116 = scmp.ne.s32.totalorder %s104, %s105
    %p117 = scmp.eq.s32.totalorder %s18, 1
    %p118 = por %p116, %p117
    %p120 = scmp.ne.s32.totalorder %s105, %s119
    %p121 = scmp.eq.s32.totalorder %s18, 0
    %p122 = por %p120, %p121
    %s123 = ssub.s32 %s19, %s31
    %p124 = scmp.eq.s32.totalorder %s123, 0
    %s126 = sadd.s32 %s125, 1
    %s127 = scalar_select %p124, %s125, %s126
    %p130 = pneg %p124
    %p131 = scmp.eq.s32.totalorder %s12, 1
    %p132 = por %p130, %p131
    %p133 = scmp.ne.s32.totalorder %s125, %s128
    %p134 = scmp.eq.s32.totalorder %s12, 0
    %p135 = por %p133, %p134
    %p136 = scmp.ne.s32.totalorder %s125, %s128
    %p137 = scmp.eq.s32.totalorder %s17, 1
    %p138 = por %p136, %p137
    %p139 = scmp.ne.s32.totalorder %s128, %s129
    %p140 = scmp.eq.s32.totalorder %s17, 0
    %p141 = por %p139, %p140
    %p142 = scmp.ne.s32.totalorder %s128, %s129
    %p143 = scmp.eq.s32.totalorder %s18, 1
    %p144 = por %p142, %p143
    %p146 = scmp.ne.s32.totalorder %s129, %s145
    %p147 = scmp.eq.s32.totalorder %s18, 0
    %p148 = por %p146, %p147
    %s149 = ssub.s32 %s19, %s31
    %p150 = scmp.eq.s32.totalorder %s149, 0
    %s152 = sadd.s32 %s151, 1
    %s153 = scalar_select %p150, %s151, %s152
    %p156 = pneg %p150
    %p157 = scmp.eq.s32.totalorder %s12, 1
    %p158 = por %p156, %p157
    %p159 = scmp.ne.s32.totalorder %s151, %s154
    %p160 = scmp.eq.s32.totalorder %s12, 0
    %p161 = por %p159, %p160
    %p162 = scmp.ne.s32.totalorder %s151, %s154
    %p163 = scmp.eq.s32.totalorder %s17, 1
    %p164 = por %p162, %p163
    %p165 = scmp.ne.s32.totalorder %s154, %s155
    %p166 = scmp.eq.s32.totalorder %s17, 0
    %p167 = por %p165, %p166
    %p168 = scmp.ne.s32.totalorder %s154, %s155
    %p169 = scmp.eq.s32.totalorder %s18, 1
    %p170 = por %p168, %p169
    %p172 = scmp.ne.s32.totalorder %s155, %s171
    %p173 = scmp.eq.s32.totalorder %s18, 0
    %p174 = por %p172, %p173
    %s175 = ssub.s32 %s19, %s31
    %s176 = ssub.s32 %s20, %s27
    %s177 = sor.u32 %s175, %s176
    %p178 = scmp.eq.s32.totalorder %s177, 0
    %s180 = sadd.s32 %s179, 1
    %s181 = scalar_select %p178, %s179, %s180
    %p184 = pneg %p178
    %p185 = scmp.eq.s32.totalorder %s12, 1
    %p186 = por %p184, %p185
    %p187 = scmp.ne.s32.totalorder %s179, %s182
    %p188 = scmp.eq.s32.totalorder %s12, 0
    %p189 = por %p187, %p188
    %p190 = scmp.ne.s32.totalorder %s179, %s182
    %p191 = scmp.eq.s32.totalorder %s17, 1
    %p192 = por %p190, %p191
    %p193 = scmp.ne.s32.totalorder %s182, %s183
    %p194 = scmp.eq.s32.totalorder %s17, 0
    %p195 = por %p193, %p194
    %p196 = scmp.ne.s32.totalorder %s182, %s183
    %p197 = scmp.eq.s32.totalorder %s18, 1
    %p198 = por %p196, %p197
    %p200 = scmp.ne.s32.totalorder %s183, %s199
    %p201 = scmp.eq.s32.totalorder %s18, 0
    %p202 = por %p200, %p201
    %p203 = scmp.le.s32.totalorder 1, %s12
    %p204 = scmp.lt.s32.totalorder %s12, 3
    %p205 = pnand %p203, %p204
    %p206 = pneg %p205
    // Predicated region
    $region9: #{pointmlp_block.5} parent=5 // pred_check
      _
    $region10: #{pointmlp_block.5} parent=5 // pred_check_branch
      %208 = sbr.rel (%p205) target = $region12
    $region11: #{pointmlp_block.5} parent=5 // pred_region
      %s209 = ssub.s32 %s12, 1
      // Predicated region
      $region13: #{pointmlp_block.5} parent=11 // pred_check
        %p210 = pneg %p73
      $region14: #{pointmlp_block.5} parent=11 // pred_check_branch
        %212 = sbr.rel (%p210) target = $region16
      $region15: #{pointmlp_block.5} parent=11 // pred_region
        _
      $region16: #{pointmlp_block.5} parent=11 // pred_fallthru
        _
      // Predicated region
      $region17: #{pointmlp_block.5} parent=11 // pred_check
        %p213 = pneg %p94
      $region18: #{pointmlp_block.5} parent=11 // pred_check_branch
        %215 = sbr.rel (%p213) target = $region20
      $region19: #{pointmlp_block.5} parent=11 // pred_region
        _
      $region20: #{pointmlp_block.5} parent=11 // pred_fallthru
        _
      // Predicated region
      $region21: #{pointmlp_block.5} parent=11 // pred_check
        %p216 = pneg %p115
      $region22: #{pointmlp_block.5} parent=11 // pred_check_branch
        %218 = sbr.rel (%p216) target = $region24
      $region23: #{pointmlp_block.5} parent=11 // pred_region
        _
      $region24: #{pointmlp_block.5} parent=11 // pred_fallthru
        _
    $region12: #{pointmlp_block.5} parent=5 // pred_fallthru
      _
    %p219 = scmp.lt.s32.totalorder %s12, 2
    // Predicated region
    $region25: #{pointmlp_block.5} parent=5 // pred_check
      %p220 = pneg %p219
    $region26: #{pointmlp_block.5} parent=5 // pred_check_branch
      %222 = sbr.rel (%p220) target = $region28
    $region27: #{pointmlp_block.5} parent=5 // pred_region
      // Predicated region
      $region29: #{pointmlp_block.5} parent=27 // pred_check
        %p223 = pneg %p46
      $region30: #{pointmlp_block.5} parent=27 // pred_check_branch
        %225 = sbr.rel (%p223) target = $region32
      $region31: #{pointmlp_block.5} parent=27 // pred_region
        %s226 = smul.u32 2, %s20
        %p227 = scmp.lt.s32.totalorder %s19, 1
        %s228 = scalar_select %p227, %s19, 1
        %p229 = scmp.lt.s32.totalorder %s226, 1
        %s230 = scalar_select %p229, %s226, 1
        %s231 = smul.addr %s228, 2
        %s232 = sadd.s32 %s230, %s231
        %s233 = smul.addr %s232, 4
        %s234 = scalar_lea.vmem %s0, %s233
        %s235 = smul.u32 2, %s20
      $region32: #{pointmlp_block.5} parent=27 // pred_fallthru
        _
      // Predicated region
      $region33: #{pointmlp_block.5} parent=27 // pred_check
        %p236 = pneg %p135
      $region34: #{pointmlp_block.5} parent=27 // pred_check_branch
        %238 = sbr.rel (%p236) target = $region36
      $region35: #{pointmlp_block.5} parent=27 // pred_region
        %p239 = scmp.lt.s32.totalorder %s19, 1
        %s240 = scalar_select %p239, %s19, 1
        %s241 = scalar_lea.vmem %s4, %s240
      $region36: #{pointmlp_block.5} parent=27 // pred_fallthru
        _
      // Predicated region
      $region37: #{pointmlp_block.5} parent=27 // pred_check
        %p242 = pneg %p161
      $region38: #{pointmlp_block.5} parent=27 // pred_check_branch
        %244 = sbr.rel (%p242) target = $region40
      $region39: #{pointmlp_block.5} parent=27 // pred_region
        %p245 = scmp.lt.s32.totalorder %s19, 1
        %s246 = scalar_select %p245, %s19, 1
        %s247 = scalar_lea.vmem %s5, %s246
      $region40: #{pointmlp_block.5} parent=27 // pred_fallthru
        _
    $region28: #{pointmlp_block.5} parent=5 // pred_fallthru
      _
    %p248 = scmp.le.s32.totalorder 1, %s12
    %p249 = scmp.lt.s32.totalorder %s12, 3
    %p250 = pnand %p248, %p249
    %p251 = pneg %p250
    // Predicated region
    $region41: #{pointmlp_block.5} parent=5 // pred_check
      _
    $region42: #{pointmlp_block.5} parent=5 // pred_check_branch
      %253 = sbr.rel (%p250) target = $region44
    $region43: #{pointmlp_block.5} parent=5 // pred_region
      %s254 = ssub.s32 %s12, 1
      %s255 = smul.u32 2, %s22
      %p256 = scmp.lt.s32.totalorder %s21, 1
      %s257 = scalar_select %p256, %s21, 1
      %p258 = scmp.lt.s32.totalorder %s255, 1
      %s259 = scalar_select %p258, %s255, 1
      %s260 = smul.addr %s257, 2
      %s261 = sadd.s32 %s259, %s260
      %s262 = smul.addr %s261, 4
      %s263 = scalar_lea.vmem %s0, %s262
      %p264 = pneg %p52
      %p265 = pneg %p49
      %p266 = pneg %p73
      %p267 = pneg %p70
      %p268 = pneg %p94
      %p269 = pneg %p91
      %p270 = pneg %p115
      %p271 = pneg %p112
      %p272 = scmp.lt.s32.totalorder %s21, 1
      %s273 = scalar_select %p272, %s21, 1
      %s274 = scalar_lea.vmem %s4, %s273
      %p275 = pneg %p141
      %p276 = pneg %p138
      %p277 = scmp.lt.s32.totalorder %s21, 1
      %s278 = scalar_select %p277, %s21, 1
      %s279 = scalar_lea.vmem %s5, %s278
      %p280 = pneg %p167
      %p281 = pneg %p164
      %p282 = pneg %p195
      %p283 = pneg %p192
      %s284 = smul.u32 2, %s22
      %p285 = scmp.lt.s32.totalorder %s21, 1
      %s286 = scalar_select %p285, %s21, 1
      %p287 = scmp.lt.s32.totalorder %s284, 1
      %s288 = scalar_select %p287, %s284, 1
      %s289 = smul.addr %s286, 2
      %s290 = sadd.s32 %s288, %s289
      %s291 = smul.addr %s290, 8
      %s292 = scalar_lea.vmem %s6, %s291
      %s293 = smul.u32 2, %s22
      %p294 = scmp.lt.s32.totalorder %s21, 1
      %s295 = scalar_select %p294, %s21, 1
      %p296 = scmp.lt.s32.totalorder %s293, 1
      %s297 = scalar_select %p296, %s293, 1
      %s298 = smul.addr %s295, 2
      %s299 = sadd.s32 %s297, %s298
      %s300 = smul.addr %s299, 4
      %s301 = scalar_lea.vmem %s0, %s300
      %s302 = smul.u32 2, %s22
      %p303 = scmp.lt.s32.totalorder %s21, 1
      %s304 = scalar_select %p303, %s21, 1
      %s305 = scalar_lea.vmem %s4, %s304
      %p306 = scmp.lt.s32.totalorder %s21, 1
      %s307 = scalar_select %p306, %s21, 1
      %s308 = scalar_lea.vmem %s5, %s307
      %s309 = smul.u32 2, %s22
      %p310 = scmp.lt.s32.totalorder %s21, 1
      %s311 = scalar_select %p310, %s21, 1
      %p312 = scmp.lt.s32.totalorder %s309, 1
      %s313 = scalar_select %p312, %s309, 1
      %s314 = smul.addr %s311, 2
      %s315 = sadd.s32 %s313, %s314
      %s316 = smul.addr %s315, 8
      %s317 = scalar_lea.vmem %s6, %s316
      %s318 = smul.u32 2, %s22
      %v320 = vld [vmem:[%s301] sm:$0xf]
      %v321 = vld [vmem:[%s301 + $0x4] sm:$0xf]
      %v322 = vld [vmem:[%s1] sm:$0xff]
      %v325 = vunpack.c.l.b16 %v320
      %v326 = vunpack.c.l.b16 %v321
      %v327 = vpack.c.b16 %v326, %v325
      %v329 = vunpack.c.l.b16 %v322
      %v330 = vunpack.c.h.b16 %v322
      %v331 = vpack.c.b16 %v329, %v329
      %v332 = vpack.c.b16 %v330, %v330
      %vm333 = vcmask 64512
      %v335 = vsel %vm333, %v327, 0
      %vm337 = vcmask 1043456
      %v339 = vsel %vm337, %v331, 0
      %v342 = vsel %vm337, %v332, 0
      %344 = vmatprep.subr.bf16.mxu0 0
      %345 = vmatpush1.bf16.msra.mxu0 0
      %346 = vmatprep.subr.bf16.mxu0 0
      %347 = vmatpush1.bf16.msra.mxu0 0
      %348 = vmatprep.subr.bf16.mxu0 0
      %349 = vmatpush1.bf16.msra.mxu0 0
      %350 = vmatprep.subr.bf16.mxu0 0
      %351 = vmatpush1.bf16.msra.mxu0 0
      %352 = vmatprep.subr.bf16.mxu0 0
      %353 = vmatpush1.bf16.msra.mxu0 0
      %354 = vmatprep.subr.bf16.mxu0 0
      %355 = vmatpush1.bf16.msra.mxu0 0
      %356 = vmatprep.subr.bf16.mxu0 0
      %357 = vmatpush1.bf16.msra.mxu0 0
      %358 = vmatprep.subr.bf16.mxu0 %v342
      %359 = vmatpush1.bf16.msra.mxu0 %v339
      %360 = vmatprep.subr.bf16.mxu0 0
      %361 = vmatpush2.bf16.msra.mxu0 0
      %362 = vmatprep.subr.bf16.mxu0 0
      %363 = vmatpush2.bf16.msra.mxu0 0
      %364 = vmatprep.subr.bf16.mxu0 0
      %365 = vmatpush2.bf16.msra.mxu0 0
      %366 = vmatprep.subr.bf16.mxu0 0
      %367 = vmatpush2.bf16.msra.mxu0 0
      %368 = vmatprep.subr.bf16.mxu0 0
      %369 = vmatpush2.bf16.msra.mxu0 0
      %370 = vmatprep.subr.bf16.mxu0 0
      %371 = vmatpush2.bf16.msra.mxu0 0
      %372 = vmatprep.subr.bf16.mxu0 0
      %373 = vmatpush2.bf16.msra.mxu0 0
      %374 = vmatprep.subr.bf16.mxu0 0
      %375 = vmatpush2.bf16.msra.mxu0 0
      %376 = vmatprep.mubr.bf16.mxu0 0
      %377 = vmatmul.mubr.bf16.gmra.mxu0 %v335
      %v378 = vpop.f32.mrf.mxu0
      %v379 = vadd.f32 0.0, %v378
      %v380 = vpop.f32.mrf.mxu0
      %v381 = vadd.f32 0.0, %v380
      %v382 = vpop.f32.mrf.mxu0
      %v383 = vadd.f32 0.0, %v382
      %v384 = vpop.f32.mrf.mxu0
      %v385 = vadd.f32 0.0, %v384
      %386 = vdwg.mxu0
      %v387 = vld [vmem:[%s2] sm:$0x1]
      %v389 = vlaneseq
      %v390 = vshrl.u32 %v389, 7
      %v391 = vsub.s32 0, %v390
      %v392 = vrot.slane %v387, %v391
      %v394 = vadd.f32 %v379, %v392
      %v395 = vadd.f32 %v383, %v392
      %v396 = vmax.f32 %v394, 0.0
      %v397 = vmax.f32 %v395, 0.0
      %v398 = vpack.c.bf16 %v397, %v396
      %v399 = vld [vmem:[%s3] sm:$0xf]
      %v400 = vld [vmem:[%s3 + $0x4] sm:$0xf]
      %v401 = vld [vmem:[%s3 + $0x8] sm:$0xf]
      %v402 = vld [vmem:[%s3 + $0xc] sm:$0xf]
      %v403 = vld [vmem:[%s3 + $0x10] sm:$0xf]
      %v404 = vld [vmem:[%s3 + $0x14] sm:$0xf]
      %v405 = vld [vmem:[%s3 + $0x18] sm:$0xf]
      %v406 = vld [vmem:[%s3 + $0x1c] sm:$0xf]
      %v407 = vld [vmem:[%s3 + $0x20] sm:$0xf]
      %v408 = vld [vmem:[%s3 + $0x24] sm:$0xf]
      %v409 = vld [vmem:[%s3 + $0x28] sm:$0xf]
      %v410 = vld [vmem:[%s3 + $0x2c] sm:$0xf]
      %v411 = vld [vmem:[%s3 + $0x30] sm:$0xf]
      %v412 = vld [vmem:[%s3 + $0x34] sm:$0xf]
      %v413 = vld [vmem:[%s3 + $0x38] sm:$0xf]
      %v414 = vld [vmem:[%s3 + $0x3c] sm:$0xf]
      %v431 = vunpack.c.l.b16 %v399
      %v432 = vunpack.c.l.b16 %v400
      %v433 = vunpack.c.l.b16 %v401
      %v434 = vunpack.c.l.b16 %v402
      %v435 = vunpack.c.l.b16 %v403
      %v436 = vunpack.c.l.b16 %v404
      %v437 = vunpack.c.l.b16 %v405
      %v438 = vunpack.c.l.b16 %v406
      %v439 = vunpack.c.l.b16 %v407
      %v440 = vunpack.c.l.b16 %v408
      %v441 = vunpack.c.l.b16 %v409
      %v442 = vunpack.c.l.b16 %v410
      %v443 = vunpack.c.l.b16 %v411
      %v444 = vunpack.c.l.b16 %v412
      %v445 = vunpack.c.l.b16 %v413
      %v446 = vunpack.c.l.b16 %v414
      %v447 = vpack.c.b16 %v432, %v431
      %v448 = vpack.c.b16 %v434, %v433
      %v449 = vpack.c.b16 %v436, %v435
      %v450 = vpack.c.b16 %v438, %v437
      %v451 = vpack.c.b16 %v440, %v439
      %v452 = vpack.c.b16 %v442, %v441
      %v453 = vpack.c.b16 %v444, %v443
      %v454 = vpack.c.b16 %v446, %v445
      %463 = vmatprep.subr.bf16.mxu0 0
      %464 = vmatpush1.bf16.msra.mxu0 %v454
      %465 = vmatprep.subr.bf16.mxu0 0
      %466 = vmatpush1.bf16.msra.mxu0 %v453
      %467 = vmatprep.subr.bf16.mxu0 0
      %468 = vmatpush1.bf16.msra.mxu0 %v452
      %469 = vmatprep.subr.bf16.mxu0 0
      %470 = vmatpush1.bf16.msra.mxu0 %v451
      %471 = vmatprep.subr.bf16.mxu0 0
      %472 = vmatpush1.bf16.msra.mxu0 %v450
      %473 = vmatprep.subr.bf16.mxu0 0
      %474 = vmatpush1.bf16.msra.mxu0 %v449
      %475 = vmatprep.subr.bf16.mxu0 0
      %476 = vmatpush1.bf16.msra.mxu0 %v448
      %477 = vmatprep.subr.bf16.mxu0 0
      %478 = vmatpush1.bf16.msra.mxu0 %v447
      %479 = vmatprep.subr.bf16.mxu0 0
      %480 = vmatpush2.bf16.msra.mxu0 0
      %481 = vmatprep.subr.bf16.mxu0 0
      %482 = vmatpush2.bf16.msra.mxu0 0
      %483 = vmatprep.subr.bf16.mxu0 0
      %484 = vmatpush2.bf16.msra.mxu0 0
      %485 = vmatprep.subr.bf16.mxu0 0
      %486 = vmatpush2.bf16.msra.mxu0 0
      %487 = vmatprep.subr.bf16.mxu0 0
      %488 = vmatpush2.bf16.msra.mxu0 0
      %489 = vmatprep.subr.bf16.mxu0 0
      %490 = vmatpush2.bf16.msra.mxu0 0
      %491 = vmatprep.subr.bf16.mxu0 0
      %492 = vmatpush2.bf16.msra.mxu0 0
      %493 = vmatprep.subr.bf16.mxu0 0
      %494 = vmatpush2.bf16.msra.mxu0 0
      %495 = vmatprep.mubr.bf16.mxu0 0
      %496 = vmatmul.mubr.bf16.gmra.mxu0 %v398
      %v497 = vpop.f32.mrf.mxu0
      %v498 = vadd.f32 0.0, %v497
      %v499 = vpop.f32.mrf.mxu0
      %v500 = vpop.f32.mrf.mxu0
      %v501 = vadd.f32 0.0, %v500
      %v502 = vpop.f32.mrf.mxu0
      %503 = vdwg.mxu0
      %v504 = vld [vmem:[%s305] sm:$0x1]
      %v506 = vlaneseq
      %v507 = vshrl.u32 %v506, 7
      %v508 = vsub.s32 0, %v507
      %v509 = vrot.slane %v504, %v508
      %v511 = vmul.f32 %v498, %v509
      %v512 = vmul.f32 %v501, %v509
      %v513 = vld [vmem:[%s308] sm:$0x1]
      %v515 = vlaneseq
      %v516 = vshrl.u32 %v515, 7
      %v517 = vsub.s32 0, %v516
      %v518 = vrot.slane %v513, %v517
      %v520 = vadd.f32 %v511, %v518
      %v521 = vadd.f32 %v512, %v518
      %v522 = vadd.f32 %v520, %v381
      %v523 = vadd.f32 %v521, %v385
      %v524 = vmax.f32 %v522, 0.0
      %v525 = vmax.f32 %v523, 0.0
      %526 = vst [vmem:[%s317] sm:$0xff] %v524
      %527 = vst [vmem:[%s317 + $0x8] sm:$0xff] %v525
      %s528 = smul.u32 2, %s22
      %p529 = scmp.lt.s32.totalorder %s21, 1
      %s530 = scalar_select %p529, %s21, 1
      %p531 = scmp.lt.s32.totalorder %s528, 1
      %s532 = scalar_select %p531, %s528, 1
      %s533 = smul.addr %s530, 2
      %s534 = sadd.s32 %s532, %s533
      %s535 = smul.addr %s534, 8
      %s536 = scalar_lea.vmem %s6, %s535
      // Predicated region
      $region45: #{pointmlp_block.5} parent=43 // pred_check
        %p537 = pneg %p192
      $region46: #{pointmlp_block.5} parent=43 // pred_check_branch
        %539 = sbr.rel (%p537) target = $region48
      $region47: #{pointmlp_block.5} parent=43 // pred_region
        %s540 = smul.u32 2, %s22
      $region48: #{pointmlp_block.5} parent=43 // pred_fallthru
        _
    $region44: #{pointmlp_block.5} parent=5 // pred_fallthru
      _
    %p541 = scmp.le.s32.totalorder 2, %s12
    // Predicated region
    $region49: #{pointmlp_block.5} parent=5 // pred_check
      %p542 = pneg %p541
    $region50: #{pointmlp_block.5} parent=5 // pred_check_branch
      %544 = sbr.rel (%p542) target = $region52
    $region51: #{pointmlp_block.5} parent=5 // pred_region
      %s545 = ssub.s32 %s12, 2
      // Predicated region
      $region53: #{pointmlp_block.5} parent=51 // pred_check
        %p546 = pneg %p198
      $region54: #{pointmlp_block.5} parent=51 // pred_check_branch
        %548 = sbr.rel (%p546) target = $region56
      $region55: #{pointmlp_block.5} parent=51 // pred_region
        %s549 = smul.u32 2, %s24
        %p550 = scmp.lt.s32.totalorder %s23, 1
        %s551 = scalar_select %p550, %s23, 1
        %p552 = scmp.lt.s32.totalorder %s549, 1
        %s553 = scalar_select %p552, %s549, 1
        %s554 = smul.addr %s551, 2
        %s555 = sadd.s32 %s553, %s554
        %s556 = smul.addr %s555, 8
        %s557 = scalar_lea.vmem %s6, %s556
      $region56: #{pointmlp_block.5} parent=51 // pred_fallthru
        _
    $region52: #{pointmlp_block.5} parent=5 // pred_fallthru
      _
  $region6: #{pointmlp_block.5} parent=0 // loop_footer
    %s16 = sadd.s32 1, %s12
  $region7: #{pointmlp_block.5} parent=0 // loop_footer_branch
    %11 = sbr.rel target = $region3
  $region8: #{pointmlp_block.5} parent=0 // loop_exit
    _

</llo_original>
